<compile_context>
chip_gen: v7x
topology: tpu7x:2x2x1
jax: 0.10.0
libtpu: 0.0.40
codegen_flags: <defaults>
</compile_context>

<pallas_src>
import math
import jax
import jax.numpy as jnp
from jax.experimental import pallas as pl
from jax.experimental.pallas import tpu as pltpu


def dac_structure(queries_patch_size, queries_patch_num,
                  keys_patch_size, keys_patch_num,
                  values=None, patch_index=0, attn_mask=None, *,
                  win_size, patch_size, channel, scale=None,
                  mask_flag=True, output_attention=True):
    """Forward of DAC_structure.

    queries/keys_patch_size : (B, L1, H, E) with L1 = win_size // p
    queries/keys_patch_num  : (B, L2, H, E) with L2 = p
    B = batch * channel (channel-minor, matching einops reduce '(b c) ...').
    Returns (series_patch_size, series_patch_num), each (B//channel, H, win, win),
    or None when output_attention=False (mirrors the PyTorch module).
    """
    del values, attn_mask, mask_flag  # unused by the reference forward

    B_in, L1, H, E1 = queries_patch_size.shape
    _, S1, _, _ = keys_patch_size.shape
    _, L2, _, E2 = queries_patch_num.shape
    _, S2, _, _ = keys_patch_num.shape
    p = patch_size[patch_index]
    assert L1 == S1 and L2 == S2
    assert L1 * p == win_size and L2 * (win_size // p) == win_size
    assert B_in % channel == 0
    B_out = B_in // channel
    CH = channel * H

    scale_ps = scale if scale is not None else 1.0 / math.sqrt(E1)
    scale_pn = scale if scale is not None else 1.0 / math.sqrt(E2)

    # (B, L, H, E) -> (B*H, L, E); rows ordered (b_out, c, h) so a block of
    # channel*H consecutive rows is exactly one output batch's channel group.
    def to_rows(x):
        b, l, h, e = x.shape
        return jnp.transpose(x, (0, 2, 1, 3)).reshape(b * h, l, e)

    q_ps = to_rows(queries_patch_size)
    k_ps = to_rows(keys_patch_size)
    q_pn = to_rows(queries_patch_num)
    k_pn = to_rows(keys_patch_num)

    # Constant 0/1 expansion matrices (built once, broadcast over the grid).
    rows = jnp.arange(win_size)[:, None]
    # einops repeat 'm -> (m p)'  : nearest-neighbour upsample by p.
    r_ps = (rows // p == jnp.arange(L1)[None, :]).astype(jnp.float32)   # (win, L1)
    # torch .repeat(win//p)       : tiling.
    r_pn = (rows % L2 == jnp.arange(L2)[None, :]).astype(jnp.float32)   # (win, L2)

    def kernel(q_ps_ref, k_ps_ref, q_pn_ref, k_pn_ref, r_ps_ref, r_pn_ref,
               o_ps_ref, o_pn_ref):
        def branch(q_ref, k_ref, r_ref, o_ref, sc):
            q = q_ref[...]                                   # (C*H, L, E)
            k = k_ref[...]                                   # (C*H, S, E)
            scores = jnp.einsum('ble,bse->bls', q, k,
                                preferred_element_type=jnp.float32) * sc
            m = jnp.max(scores, axis=-1, keepdims=True)
            e = jnp.exp(scores - m)
            attn = e / jnp.sum(e, axis=-1, keepdims=True)
            # TODO(synk): nn.Dropout(p=0.05) is identity in eval mode; no RNG mask.
            # Channel mean (rows are (c, h)-ordered).
            attn = attn.reshape(channel, H, attn.shape[-2], attn.shape[-1])
            attn_mean = jnp.sum(attn, axis=0) * (1.0 / channel)   # (H, L, S)
            r = r_ref[...]                                        # (win, L)
            r_t = r.T                                             # (L, win), hoisted
            for h in range(H):   # static unroll; H (n_heads) is small
                up = jnp.dot(r, attn_mean[h],
                             preferred_element_type=jnp.float32)  # (win, S)
                o_ref[h] = jnp.dot(up, r_t,
                                   preferred_element_type=jnp.float32
                                   ).astype(o_ref.dtype)          # (win, win)

        branch(q_ps_ref, k_ps_ref, r_ps_ref, o_ps_ref, scale_ps)
        branch(q_pn_ref, k_pn_ref, r_pn_ref, o_pn_ref, scale_pn)

    out_shape = (
        jax.ShapeDtypeStruct((B_out, H, win_size, win_size), jnp.float32),
        jax.ShapeDtypeStruct((B_out, H, win_size, win_size), jnp.float32),
    )
    series_ps, series_pn = pl.pallas_call(
        kernel,
        out_shape=out_shape,
        grid_spec=pltpu.PrefetchScalarGridSpec(
            num_scalar_prefetch=0,
            grid=(B_out,),
            in_specs=[
                pl.BlockSpec((CH, L1, E1), lambda b: (b, 0, 0)),
                pl.BlockSpec((CH, S1, E1), lambda b: (b, 0, 0)),
                pl.BlockSpec((CH, L2, E2), lambda b: (b, 0, 0)),
                pl.BlockSpec((CH, S2, E2), lambda b: (b, 0, 0)),
                pl.BlockSpec((win_size, L1), lambda b: (0, 0)),
                pl.BlockSpec((win_size, L2), lambda b: (0, 0)),
            ],
            out_specs=[
                pl.BlockSpec((pl.Squeezed(), H, win_size, win_size),
                             lambda b: (b, 0, 0, 0)),
                pl.BlockSpec((pl.Squeezed(), H, win_size, win_size),
                             lambda b: (b, 0, 0, 0)),
            ],
        ),
        compiler_params=pltpu.CompilerParams(
            dimension_semantics=("parallel",)),
    )(q_ps, k_ps, q_pn, k_pn, r_ps, r_pn)

    if not output_attention:
        return None   # mirrors the PyTorch module when output_attention=False
    return series_ps, series_pn


def reference(q_ps, k_ps, q_pn, k_pn, win_size, p, channel):
    # Independent pure-JAX reference of the same forward pass.
    B, L1, H, E1 = q_ps.shape
    s1 = jnp.einsum('blhe,bshe->bhls', q_ps, k_ps) * (1.0 / math.sqrt(E1))
    a1 = jax.nn.softmax(s1, axis=-1)
    _, L2, _, E2 = q_pn.shape
    s2 = jnp.einsum('blhe,bshe->bhls', q_pn, k_pn) * (1.0 / math.sqrt(E2))
    a2 = jax.nn.softmax(s2, axis=-1)
    # einops repeat '(m p)(n p)'   (nearest-neighbour upsample)
    a1 = jnp.repeat(jnp.repeat(a1, p, axis=2), p, axis=3)
    # torch .repeat(1, 1, win//p, win//p)  (tiling)
    reps = win_size // p
    a2 = jnp.tile(a2, (1, 1, reps, reps))
    # einops reduce '(b c) ... -> b ...' mean
    Bo = B // channel
    a1 = a1.reshape(Bo, channel, H, win_size, win_size).mean(axis=1)
    a2 = a2.reshape(Bo, channel, H, win_size, win_size).mean(axis=1)
    return a1, a2


if __name__ == "__main__":
    batch, channel = 2, 2
    win_size = 16
    patch_size = (4,)
    patch_index = 0
    H, E = 2, 8
    p = patch_size[patch_index]
    L_ps = win_size // p          # tokens in the patch_size branch
    L_pn = p                      # tokens in the patch_num branch
    B_in = batch * channel

    key = jax.random.PRNGKey(0)
    k1, k2, k3, k4 = jax.random.split(key, 4)

    def make(k, L):
        x = jax.random.normal(k, (B_in, L, H, E), dtype=jnp.float32)
        # Snap to the bf16 grid so MXU default-precision operand truncation is
        # lossless for the QK^T matmul and the comparison stays tight.
        return x.astype(jnp.bfloat16).astype(jnp.float32)

    q_ps, k_ps = make(k1, L_ps), make(k2, L_ps)
    q_pn, k_pn = make(k3, L_pn), make(k4, L_pn)

    out = dac_structure(q_ps, q_pn, k_ps, k_pn,
                        values=None, patch_index=patch_index, attn_mask=None,
                        win_size=win_size, patch_size=patch_size,
                        channel=channel, output_attention=True)
    series_ps, series_pn = jax.block_until_ready(out)

    ref_ps, ref_pn = reference(q_ps, k_ps, q_pn, k_pn, win_size, p, channel)
    assert series_ps.shape == (batch, H, win_size, win_size)
    assert series_pn.shape == (batch, H, win_size, win_size)
    # Tolerance covers MXU default-precision (bf16 operand) rounding in the
    # in-kernel upsample matmuls; attention values are <= 1.
    assert jnp.allclose(series_ps, ref_ps, atol=5e-3, rtol=5e-3), "patch_size mismatch"
    assert jnp.allclose(series_pn, ref_pn, atol=5e-3, rtol=5e-3), "patch_num mismatch"
    print("KERNEL_OK")
</pallas_src>

<mosaic_0001>
module attributes {stable_mosaic.version = 11 : i64} {
  func.func @kernel(%arg0: i32, %arg1: memref<4x4x8xf32, #tpu.memory_space<vmem>>, %arg2: memref<4x4x8xf32, #tpu.memory_space<vmem>>, %arg3: memref<4x4x8xf32, #tpu.memory_space<vmem>>, %arg4: memref<4x4x8xf32, #tpu.memory_space<vmem>>, %arg5: memref<16x4xf32, #tpu.memory_space<vmem>>, %arg6: memref<16x4xf32, #tpu.memory_space<vmem>>, %arg7: memref<1x2x16x16xf32, #tpu.memory_space<vmem>>, %arg8: memref<1x2x16x16xf32, #tpu.memory_space<vmem>>) attributes {dimension_semantics = [#tpu.dimension_semantics<parallel>], iteration_bounds = array<i64: 2>, scalar_prefetch = 0 : i64, scratch_operands = 0 : i64, tpu.core_type = #tpu.core_type<tc>, window_params = [{transform_indices = @transform_0, window_bounds = array<i64: 4, 4, 8>}, {transform_indices = @transform_1, window_bounds = array<i64: 4, 4, 8>}, {transform_indices = @transform_2, window_bounds = array<i64: 4, 4, 8>}, {transform_indices = @transform_3, window_bounds = array<i64: 4, 4, 8>}, {pipeline_mode = #tpu.pipeline_mode<synchronous>, transform_indices = @transform_4, window_bounds = array<i64: 16, 4>}, {pipeline_mode = #tpu.pipeline_mode<synchronous>, transform_indices = @transform_5, window_bounds = array<i64: 16, 4>}, {transform_indices = @transform_6, window_bounds = array<i64: 1, 2, 16, 16>}, {transform_indices = @transform_7, window_bounds = array<i64: 1, 2, 16, 16>}]} {
    %c0 = arith.constant 0 : index
    %c0_0 = arith.constant 0 : index
    %c0_1 = arith.constant 0 : index
    %0 = vector.load %arg1[%c0, %c0_0, %c0_1] : memref<4x4x8xf32, #tpu.memory_space<vmem>>, vector<4x4x8xf32>
    %c0_2 = arith.constant 0 : index
    %c0_3 = arith.constant 0 : index
    %c0_4 = arith.constant 0 : index
    %1 = vector.load %arg2[%c0_2, %c0_3, %c0_4] : memref<4x4x8xf32, #tpu.memory_space<vmem>>, vector<4x4x8xf32>
    "tpu.trace_start"() <{level = 10 : i32, message = "ble,bse->bls"}> : () -> ()
    %cst = arith.constant dense<0.000000e+00> : vector<4x4x4xf32>
    %2 = tpu.matmul %0, %1, %cst {dimension_numbers = #tpu.dot_dimension_numbers<[2], [2], [1], [1], [0, 0, 0, 1, 1, 1], [0], [0]>} : vector<4x4x8xf32>, vector<4x4x8xf32>, vector<4x4x4xf32> -> vector<4x4x4xf32>
    "tpu.trace_stop"() : () -> ()
    %cst_5 = arith.constant 0.353553385 : f32
    %3 = vector.broadcast %cst_5 : f32 to vector<4x4x4xf32>
    %4 = arith.mulf %2, %3 : vector<4x4x4xf32>
    %cst_6 = arith.constant dense<0xFF800000> : vector<4x4xf32>
    %5 = vector.multi_reduction <maximumf>, %4, %cst_6 [2] : vector<4x4x4xf32> to vector<4x4xf32>
    %6 = vector.shape_cast %5 : vector<4x4xf32> to vector<4x4x1xf32>
    %7 = vector.broadcast %6 : vector<4x4x1xf32> to vector<4x4x4xf32>
    %8 = arith.subf %4, %7 : vector<4x4x4xf32>
    %9 = math.exp %8 : vector<4x4x4xf32>
    %cst_7 = arith.constant dense<0.000000e+00> : vector<4x4xf32>
    %10 = vector.multi_reduction <add>, %9, %cst_7 [2] : vector<4x4x4xf32> to vector<4x4xf32>
    %11 = vector.shape_cast %10 : vector<4x4xf32> to vector<4x4x1xf32>
    %12 = vector.broadcast %11 : vector<4x4x1xf32> to vector<4x4x4xf32>
    %13 = arith.divf %9, %12 : vector<4x4x4xf32>
    %14 = vector.shape_cast %13 : vector<4x4x4xf32> to vector<2x2x4x4xf32>
    %cst_8 = arith.constant dense<0.000000e+00> : vector<2x4x4xf32>
    %15 = vector.multi_reduction <add>, %14, %cst_8 [0] : vector<2x2x4x4xf32> to vector<2x4x4xf32>
    %cst_9 = arith.constant 5.000000e-01 : f32
    %16 = vector.broadcast %cst_9 : f32 to vector<2x4x4xf32>
    %17 = arith.mulf %15, %16 : vector<2x4x4xf32>
    %c0_10 = arith.constant 0 : index
    %c0_11 = arith.constant 0 : index
    %18 = vector.load %arg5[%c0_10, %c0_11] : memref<16x4xf32, #tpu.memory_space<vmem>>, vector<16x4xf32>
    %19 = tpu.transpose %18, [1, 0] : vector<16x4xf32> -> vector<4x16xf32>
    %20 = vector.extract_strided_slice %17 {offsets = [0, 0, 0], sizes = [1, 4, 4], strides = [1, 1, 1]} : vector<2x4x4xf32> to vector<1x4x4xf32>
    %21 = vector.shape_cast %20 : vector<1x4x4xf32> to vector<4x4xf32>
    %cst_12 = arith.constant dense<0.000000e+00> : vector<16x4xf32>
    %22 = tpu.matmul %18, %21, %cst_12 {dimension_numbers = #tpu.dot_dimension_numbers<[1], [0], [0], [1], [0, 0, 1, 1], [], []>} : vector<16x4xf32>, vector<4x4xf32>, vector<16x4xf32> -> vector<16x4xf32>
    %cst_13 = arith.constant dense<0.000000e+00> : vector<16x16xf32>
    %23 = tpu.matmul %22, %19, %cst_13 {dimension_numbers = #tpu.dot_dimension_numbers<[1], [0], [0], [1], [0, 0, 1, 1], [], []>} : vector<16x4xf32>, vector<4x16xf32>, vector<16x16xf32> -> vector<16x16xf32>
    %c0_14 = arith.constant 0 : index
    %c0_15 = arith.constant 0 : index
    %c0_16 = arith.constant 0 : index
    %c0_17 = arith.constant 0 : index
    %24 = vector.load %arg7[%c0_14, %c0_15, %c0_16, %c0_17] : memref<1x2x16x16xf32, #tpu.memory_space<vmem>>, vector<1x1x16x16xf32>
    %25 = vector.shape_cast %24 : vector<1x1x16x16xf32> to vector<16x16xf32>
    %26 = vector.shape_cast %23 : vector<16x16xf32> to vector<1x1x16x16xf32>
    tpu.vector_store %arg7[%c0_14, %c0_15, %c0_16, %c0_17], %26 {strides = array<i32>} : memref<1x2x16x16xf32, #tpu.memory_space<vmem>>, vector<1x1x16x16xf32>,
    %27 = vector.extract_strided_slice %17 {offsets = [1, 0, 0], sizes = [1, 4, 4], strides = [1, 1, 1]} : vector<2x4x4xf32> to vector<1x4x4xf32>
    %28 = vector.shape_cast %27 : vector<1x4x4xf32> to vector<4x4xf32>
    %cst_18 = arith.constant dense<0.000000e+00> : vector<16x4xf32>
    %29 = tpu.matmul %18, %28, %cst_18 {dimension_numbers = #tpu.dot_dimension_numbers<[1], [0], [0], [1], [0, 0, 1, 1], [], []>} : vector<16x4xf32>, vector<4x4xf32>, vector<16x4xf32> -> vector<16x4xf32>
    %cst_19 = arith.constant dense<0.000000e+00> : vector<16x16xf32>
    %30 = tpu.matmul %29, %19, %cst_19 {dimension_numbers = #tpu.dot_dimension_numbers<[1], [0], [0], [1], [0, 0, 1, 1], [], []>} : vector<16x4xf32>, vector<4x16xf32>, vector<16x16xf32> -> vector<16x16xf32>
    %c0_20 = arith.constant 0 : index
    %c1 = arith.constant 1 : index
    %c0_21 = arith.constant 0 : index
    %c0_22 = arith.constant 0 : index
    %31 = vector.load %arg7[%c0_20, %c1, %c0_21, %c0_22] : memref<1x2x16x16xf32, #tpu.memory_space<vmem>>, vector<1x1x16x16xf32>
    %32 = vector.shape_cast %31 : vector<1x1x16x16xf32> to vector<16x16xf32>
    %33 = vector.shape_cast %30 : vector<16x16xf32> to vector<1x1x16x16xf32>
    tpu.vector_store %arg7[%c0_20, %c1, %c0_21, %c0_22], %33 {strides = array<i32>} : memref<1x2x16x16xf32, #tpu.memory_space<vmem>>, vector<1x1x16x16xf32>,
    %c0_23 = arith.constant 0 : index
    %c0_24 = arith.constant 0 : index
    %c0_25 = arith.constant 0 : index
    %34 = vector.load %arg3[%c0_23, %c0_24, %c0_25] : memref<4x4x8xf32, #tpu.memory_space<vmem>>, vector<4x4x8xf32>
    %c0_26 = arith.constant 0 : index
    %c0_27 = arith.constant 0 : index
    %c0_28 = arith.constant 0 : index
    %35 = vector.load %arg4[%c0_26, %c0_27, %c0_28] : memref<4x4x8xf32, #tpu.memory_space<vmem>>, vector<4x4x8xf32>
    "tpu.trace_start"() <{level = 10 : i32, message = "ble,bse->bls"}> : () -> ()
    %cst_29 = arith.constant dense<0.000000e+00> : vector<4x4x4xf32>
    %36 = tpu.matmul %34, %35, %cst_29 {dimension_numbers = #tpu.dot_dimension_numbers<[2], [2], [1], [1], [0, 0, 0, 1, 1, 1], [0], [0]>} : vector<4x4x8xf32>, vector<4x4x8xf32>, vector<4x4x4xf32> -> vector<4x4x4xf32>
    "tpu.trace_stop"() : () -> ()
    %cst_30 = arith.constant 0.353553385 : f32
    %37 = vector.broadcast %cst_30 : f32 to vector<4x4x4xf32>
    %38 = arith.mulf %36, %37 : vector<4x4x4xf32>
    %cst_31 = arith.constant dense<0xFF800000> : vector<4x4xf32>
    %39 = vector.multi_reduction <maximumf>, %38, %cst_31 [2] : vector<4x4x4xf32> to vector<4x4xf32>
    %40 = vector.shape_cast %39 : vector<4x4xf32> to vector<4x4x1xf32>
    %41 = vector.broadcast %40 : vector<4x4x1xf32> to vector<4x4x4xf32>
    %42 = arith.subf %38, %41 : vector<4x4x4xf32>
    %43 = math.exp %42 : vector<4x4x4xf32>
    %cst_32 = arith.constant dense<0.000000e+00> : vector<4x4xf32>
    %44 = vector.multi_reduction <add>, %43, %cst_32 [2] : vector<4x4x4xf32> to vector<4x4xf32>
    %45 = vector.shape_cast %44 : vector<4x4xf32> to vector<4x4x1xf32>
    %46 = vector.broadcast %45 : vector<4x4x1xf32> to vector<4x4x4xf32>
    %47 = arith.divf %43, %46 : vector<4x4x4xf32>
    %48 = vector.shape_cast %47 : vector<4x4x4xf32> to vector<2x2x4x4xf32>
    %cst_33 = arith.constant dense<0.000000e+00> : vector<2x4x4xf32>
    %49 = vector.multi_reduction <add>, %48, %cst_33 [0] : vector<2x2x4x4xf32> to vector<2x4x4xf32>
    %cst_34 = arith.constant 5.000000e-01 : f32
    %50 = vector.broadcast %cst_34 : f32 to vector<2x4x4xf32>
    %51 = arith.mulf %49, %50 : vector<2x4x4xf32>
    %c0_35 = arith.constant 0 : index
    %c0_36 = arith.constant 0 : index
    %52 = vector.load %arg6[%c0_35, %c0_36] : memref<16x4xf32, #tpu.memory_space<vmem>>, vector<16x4xf32>
    %53 = tpu.transpose %52, [1, 0] : vector<16x4xf32> -> vector<4x16xf32>
    %54 = vector.extract_strided_slice %51 {offsets = [0, 0, 0], sizes = [1, 4, 4], strides = [1, 1, 1]} : vector<2x4x4xf32> to vector<1x4x4xf32>
    %55 = vector.shape_cast %54 : vector<1x4x4xf32> to vector<4x4xf32>
    %cst_37 = arith.constant dense<0.000000e+00> : vector<16x4xf32>
    %56 = tpu.matmul %52, %55, %cst_37 {dimension_numbers = #tpu.dot_dimension_numbers<[1], [0], [0], [1], [0, 0, 1, 1], [], []>} : vector<16x4xf32>, vector<4x4xf32>, vector<16x4xf32> -> vector<16x4xf32>
    %cst_38 = arith.constant dense<0.000000e+00> : vector<16x16xf32>
    %57 = tpu.matmul %56, %53, %cst_38 {dimension_numbers = #tpu.dot_dimension_numbers<[1], [0], [0], [1], [0, 0, 1, 1], [], []>} : vector<16x4xf32>, vector<4x16xf32>, vector<16x16xf32> -> vector<16x16xf32>
    %c0_39 = arith.constant 0 : index
    %c0_40 = arith.constant 0 : index
    %c0_41 = arith.constant 0 : index
    %c0_42 = arith.constant 0 : index
    %58 = vector.load %arg8[%c0_39, %c0_40, %c0_41, %c0_42] : memref<1x2x16x16xf32, #tpu.memory_space<vmem>>, vector<1x1x16x16xf32>
    %59 = vector.shape_cast %58 : vector<1x1x16x16xf32> to vector<16x16xf32>
    %60 = vector.shape_cast %57 : vector<16x16xf32> to vector<1x1x16x16xf32>
    tpu.vector_store %arg8[%c0_39, %c0_40, %c0_41, %c0_42], %60 {strides = array<i32>} : memref<1x2x16x16xf32, #tpu.memory_space<vmem>>, vector<1x1x16x16xf32>,
    %61 = vector.extract_strided_slice %51 {offsets = [1, 0, 0], sizes = [1, 4, 4], strides = [1, 1, 1]} : vector<2x4x4xf32> to vector<1x4x4xf32>
    %62 = vector.shape_cast %61 : vector<1x4x4xf32> to vector<4x4xf32>
    %cst_43 = arith.constant dense<0.000000e+00> : vector<16x4xf32>
    %63 = tpu.matmul %52, %62, %cst_43 {dimension_numbers = #tpu.dot_dimension_numbers<[1], [0], [0], [1], [0, 0, 1, 1], [], []>} : vector<16x4xf32>, vector<4x4xf32>, vector<16x4xf32> -> vector<16x4xf32>
    %cst_44 = arith.constant dense<0.000000e+00> : vector<16x16xf32>
    %64 = tpu.matmul %63, %53, %cst_44 {dimension_numbers = #tpu.dot_dimension_numbers<[1], [0], [0], [1], [0, 0, 1, 1], [], []>} : vector<16x4xf32>, vector<4x16xf32>, vector<16x16xf32> -> vector<16x16xf32>
    %c0_45 = arith.constant 0 : index
    %c1_46 = arith.constant 1 : index
    %c0_47 = arith.constant 0 : index
    %c0_48 = arith.constant 0 : index
    %65 = vector.load %arg8[%c0_45, %c1_46, %c0_47, %c0_48] : memref<1x2x16x16xf32, #tpu.memory_space<vmem>>, vector<1x1x16x16xf32>
    %66 = vector.shape_cast %65 : vector<1x1x16x16xf32> to vector<16x16xf32>
    %67 = vector.shape_cast %64 : vector<16x16xf32> to vector<1x1x16x16xf32>
    tpu.vector_store %arg8[%c0_45, %c1_46, %c0_47, %c0_48], %67 {strides = array<i32>} : memref<1x2x16x16xf32, #tpu.memory_space<vmem>>, vector<1x1x16x16xf32>,
    return
  }
  func.func @transform_0(%arg0: i32) -> (i32, i32, i32) {
    %c0_i32 = arith.constant 0 : i32
    %c0_i32_0 = arith.constant 0 : i32
    %c0_i32_1 = arith.constant 0 : i32
    return %arg0, %c0_i32, %c0_i32_0 : i32, i32, i32
  }
  func.func @transform_1(%arg0: i32) -> (i32, i32, i32) {
    %c0_i32 = arith.constant 0 : i32
    %c0_i32_0 = arith.constant 0 : i32
    %c0_i32_1 = arith.constant 0 : i32
    return %arg0, %c0_i32, %c0_i32_0 : i32, i32, i32
  }
  func.func @transform_2(%arg0: i32) -> (i32, i32, i32) {
    %c0_i32 = arith.constant 0 : i32
    %c0_i32_0 = arith.constant 0 : i32
    %c0_i32_1 = arith.constant 0 : i32
    return %arg0, %c0_i32, %c0_i32_0 : i32, i32, i32
  }
  func.func @transform_3(%arg0: i32) -> (i32, i32, i32) {
    %c0_i32 = arith.constant 0 : i32
    %c0_i32_0 = arith.constant 0 : i32
    %c0_i32_1 = arith.constant 0 : i32
    return %arg0, %c0_i32, %c0_i32_0 : i32, i32, i32
  }
  func.func @transform_4(%arg0: i32) -> (i32, i32) {
    %c0_i32 = arith.constant 0 : i32
    %c0_i32_0 = arith.constant 0 : i32
    %c0_i32_1 = arith.constant 0 : i32
    return %c0_i32, %c0_i32_0 : i32, i32
  }
  func.func @transform_5(%arg0: i32) -> (i32, i32) {
    %c0_i32 = arith.constant 0 : i32
    %c0_i32_0 = arith.constant 0 : i32
    %c0_i32_1 = arith.constant 0 : i32
    return %c0_i32, %c0_i32_0 : i32, i32
  }
  func.func @transform_6(%arg0: i32) -> (i32, i32, i32, i32) {
    %c0_i32 = arith.constant 0 : i32
    %c0_i32_0 = arith.constant 0 : i32
    %c0_i32_1 = arith.constant 0 : i32
    %c0_i32_2 = arith.constant 0 : i32
    return %arg0, %c0_i32, %c0_i32_0, %c0_i32_1 : i32, i32, i32, i32
  }
  func.func @transform_7(%arg0: i32) -> (i32, i32, i32, i32) {
    %c0_i32 = arith.constant 0 : i32
    %c0_i32_0 = arith.constant 0 : i32
    %c0_i32_1 = arith.constant 0 : i32
    %c0_i32_2 = arith.constant 0 : i32
    return %arg0, %c0_i32, %c0_i32_0, %c0_i32_1 : i32, i32, i32, i32
  }
}

</mosaic_0001>

<llo_original>
// kernel: tpu_custom_call.1
$region0: #{tpu_custom_call.1}
  #allocation0 [shape = 'u32[]', space=smem, size = 0x4, offset = 0x4, fixed_abs, tag = 'smem constant byte address 0x4 - core index']
  #allocation1 [shape = 'u32[144,128]{1,0:T(1,128)}', space=vmem, size = 0x12000, scoped, tag = 'internal scratch']
  %s0 = inlined_call_operand.vmem [shape: f32[8,4,8], index: 0, kind: input, shape index: {}]
  %s1 = inlined_call_operand.hbm [shape: f32[8,4,8], index: 1, kind: input, shape index: {}]
  %s2 = inlined_call_operand.hbm [shape: f32[8,4,8], index: 2, kind: input, shape index: {}]
  %s3 = inlined_call_operand.hbm [shape: f32[8,4,8], index: 3, kind: input, shape index: {}]
  %s4 = inlined_call_operand.vmem [shape: f32[16,4], index: 4, kind: input, shape index: {}]
  %s5 = inlined_call_operand.vmem [shape: f32[16,4], index: 5, kind: input, shape index: {}]
  %s6 = inlined_call_operand.hbm [shape: f32[2,2,16,16], index: 6, kind: output, shape index: {0}]
  %s7 = inlined_call_operand.hbm [shape: f32[2,2,16,16], index: 7, kind: output, shape index: {1}]
  %8 = xla_tuple %s6, %s7
  %s9 = sld [smem:[#allocation0]]
  $region77: #{tpu_custom_call.1} parent=0
    _
  %s11 = ssub.s32 1, %s9
  %s12 = scalar_select 0, %s11, %s9
  $region1: #{tpu_custom_call.1} parent=0
    #allocation2 [shape = 'u8[16384]{0}', space=vmem, size = 0x4000, scoped, tag = 'input window, operand 1']
    #allocation3 [shape = 's32[2]{0}', space=sflag, size = 0x8, scoped, tag = 'scoped memory for tpu_custom_call.1']
    #allocation4 [shape = 's32[2]{0}', space=sflag, size = 0x8, scoped, tag = 'scoped memory for tpu_custom_call.1']
    #allocation5 [shape = 'u8[16384]{0}', space=vmem, size = 0x4000, scoped, tag = 'input window, operand 2']
    #allocation6 [shape = 's32[2]{0}', space=sflag, size = 0x8, scoped, tag = 'scoped memory for tpu_custom_call.1']
    #allocation7 [shape = 'u8[16384]{0}', space=vmem, size = 0x4000, scoped, tag = 'input window, operand 3']
    #allocation8 [shape = 'u8[32768]{0}', space=vmem, size = 0x8000, scoped, tag = 'output window, operand 0']
    #allocation9 [shape = 'u8[32768]{0}', space=vmem, size = 0x8000, scoped, tag = 'output window, operand 1']
    #allocation10 [shape = 's32[2]{0}', space=sflag, size = 0x8, scoped, tag = 'scoped memory for tpu_custom_call.1']
    %13 = vsyncpa [#allocation3], 0
    %s14 = scalar_lea.sflag [#allocation3], 1
    %15 = vsyncpa %s14, 0
    %16 = vsyncpa [#allocation6], 0
    %s17 = scalar_lea.sflag [#allocation6], 1
    %18 = vsyncpa %s17, 0
    %19 = vsyncpa [#allocation4], 0
    %s20 = scalar_lea.sflag [#allocation4], 1
    %21 = vsyncpa %s20, 0
    %22 = vsyncpa [#allocation10], 0
    %s23 = scalar_lea.sflag [#allocation10], 1
    %24 = vsyncpa %s23, 0
    loop: start=0, step=1, limit=4
    $region2: #{tpu_custom_call.1} parent=1 // loop_pre_header
      _
    $region3: #{tpu_custom_call.1} parent=1 // loop_header
      %s26 = sphi 0, %s30
      %p27 = scmp.ge.s32.totalorder %s26, 4
      %s36 = sphi 0, %s38
      %s39 = sphi 0, %s36
      %s40 = sphi 0, %s39
      %s56 = sphi 0, %s40
      %s62 = sphi 0, %s64
      %s65 = sphi 0, %s62
      %s66 = sphi 0, %s65
      %s82 = sphi 0, %s66
      %s88 = sphi 0, %s90
      %s91 = sphi 0, %s88
      %s92 = sphi 0, %s91
      %s108 = sphi 0, %s92
      %s114 = sphi 0, %s116
      %s117 = sphi 0, %s114
      %s118 = sphi 0, %s117
      %s134 = sphi 0, %s118
      %s138 = sphi 0, %s138
      %s140 = sphi 0, %s138
      %s141 = sphi 0, %s140
      %s155 = sphi 0, %s141
      %s159 = sphi 0, %s159
      %s161 = sphi 0, %s159
      %s162 = sphi 0, %s161
      %s176 = sphi 0, %s162
      %s182 = sphi 0, %s184
      %s185 = sphi 0, %s182
      %s186 = sphi 0, %s185
      %s202 = sphi 0, %s186
      %s208 = sphi 0, %s210
      %s211 = sphi 0, %s208
      %s212 = sphi 0, %s211
      %s228 = sphi 0, %s212
    $region4: #{tpu_custom_call.1} parent=1 // loop_header_branch
      %29 = sbr.rel (%p27) target = $region8
    $region5: #{tpu_custom_call.1} parent=1 // loop_body
      %s31 = ssub.s32 %s26, 1
      %s32 = ssub.s32 %s26, 2
      %s33 = sadd.s32 %s26, 1
      %s34 = ssub.s32 %s26, %s33
      %p35 = scmp.eq.s32.totalorder %s34, 0
      %s37 = sadd.s32 %s36, 1
      %s38 = scalar_select %p35, %s36, %s37
      %p41 = pneg %p35
      %p42 = scmp.eq.s32.totalorder %s26, 1
      %p43 = por %p41, %p42
      %p44 = scmp.ne.s32.totalorder %s36, %s39
      %p45 = scmp.eq.s32.totalorder %s26, 0
      %p46 = por %p44, %p45
      %p47 = scmp.ne.s32.totalorder %s36, %s39
      %p48 = scmp.eq.s32.totalorder %s31, 1
      %p49 = por %p47, %p48
      %p50 = scmp.ne.s32.totalorder %s39, %s40
      %p51 = scmp.eq.s32.totalorder %s31, 0
      %p52 = por %p50, %p51
      %p53 = scmp.ne.s32.totalorder %s39, %s40
      %p54 = scmp.eq.s32.totalorder %s32, 1
      %p55 = por %p53, %p54
      %p57 = scmp.ne.s32.totalorder %s40, %s56
      %p58 = scmp.eq.s32.totalorder %s32, 0
      %p59 = por %p57, %p58
      %s60 = ssub.s32 %s26, %s33
      %p61 = scmp.eq.s32.totalorder %s60, 0
      %s63 = sadd.s32 %s62, 1
      %s64 = scalar_select %p61, %s62, %s63
      %p67 = pneg %p61
      %p68 = scmp.eq.s32.totalorder %s26, 1
      %p69 = por %p67, %p68
      %p70 = scmp.ne.s32.totalorder %s62, %s65
      %p71 = scmp.eq.s32.totalorder %s26, 0
      %p72 = por %p70, %p71
      %p73 = scmp.ne.s32.totalorder %s62, %s65
      %p74 = scmp.eq.s32.totalorder %s31, 1
      %p75 = por %p73, %p74
      %p76 = scmp.ne.s32.totalorder %s65, %s66
      %p77 = scmp.eq.s32.totalorder %s31, 0
      %p78 = por %p76, %p77
      %p79 = scmp.ne.s32.totalorder %s65, %s66
      %p80 = scmp.eq.s32.totalorder %s32, 1
      %p81 = por %p79, %p80
      %p83 = scmp.ne.s32.totalorder %s66, %s82
      %p84 = scmp.eq.s32.totalorder %s32, 0
      %p85 = por %p83, %p84
      %s86 = ssub.s32 %s26, %s33
      %p87 = scmp.eq.s32.totalorder %s86, 0
      %s89 = sadd.s32 %s88, 1
      %s90 = scalar_select %p87, %s88, %s89
      %p93 = pneg %p87
      %p94 = scmp.eq.s32.totalorder %s26, 1
      %p95 = por %p93, %p94
      %p96 = scmp.ne.s32.totalorder %s88, %s91
      %p97 = scmp.eq.s32.totalorder %s26, 0
      %p98 = por %p96, %p97
      %p99 = scmp.ne.s32.totalorder %s88, %s91
      %p100 = scmp.eq.s32.totalorder %s31, 1
      %p101 = por %p99, %p100
      %p102 = scmp.ne.s32.totalorder %s91, %s92
      %p103 = scmp.eq.s32.totalorder %s31, 0
      %p104 = por %p102, %p103
      %p105 = scmp.ne.s32.totalorder %s91, %s92
      %p106 = scmp.eq.s32.totalorder %s32, 1
      %p107 = por %p105, %p106
      %p109 = scmp.ne.s32.totalorder %s92, %s108
      %p110 = scmp.eq.s32.totalorder %s32, 0
      %p111 = por %p109, %p110
      %s112 = ssub.s32 %s26, %s33
      %p113 = scmp.eq.s32.totalorder %s112, 0
      %s115 = sadd.s32 %s114, 1
      %s116 = scalar_select %p113, %s114, %s115
      %p119 = pneg %p113
      %p120 = scmp.eq.s32.totalorder %s26, 1
      %p121 = por %p119, %p120
      %p122 = scmp.ne.s32.totalorder %s114, %s117
      %p123 = scmp.eq.s32.totalorder %s26, 0
      %p124 = por %p122, %p123
      %p125 = scmp.ne.s32.totalorder %s114, %s117
      %p126 = scmp.eq.s32.totalorder %s31, 1
      %p127 = por %p125, %p126
      %p128 = scmp.ne.s32.totalorder %s117, %s118
      %p129 = scmp.eq.s32.totalorder %s31, 0
      %p130 = por %p128, %p129
      %p131 = scmp.ne.s32.totalorder %s117, %s118
      %p132 = scmp.eq.s32.totalorder %s32, 1
      %p133 = por %p131, %p132
      %p135 = scmp.ne.s32.totalorder %s118, %s134
      %p136 = scmp.eq.s32.totalorder %s32, 0
      %p137 = por %p135, %p136
      %s139 = sadd.s32 %s138, 1
      %p142 = scmp.eq.s32.totalorder %s26, 1
      %p143 = scmp.ne.s32.totalorder %s138, %s140
      %p144 = scmp.eq.s32.totalorder %s26, 0
      %p145 = por %p143, %p144
      %p146 = scmp.ne.s32.totalorder %s138, %s140
      %p147 = scmp.eq.s32.totalorder %s31, 1
      %p148 = por %p146, %p147
      %p149 = scmp.ne.s32.totalorder %s140, %s141
      %p150 = scmp.eq.s32.totalorder %s31, 0
      %p151 = por %p149, %p150
      %p152 = scmp.ne.s32.totalorder %s140, %s141
      %p153 = scmp.eq.s32.totalorder %s32, 1
      %p154 = por %p152, %p153
      %p156 = scmp.ne.s32.totalorder %s141, %s155
      %p157 = scmp.eq.s32.totalorder %s32, 0
      %p158 = por %p156, %p157
      %s160 = sadd.s32 %s159, 1
      %p163 = scmp.eq.s32.totalorder %s26, 1
      %p164 = scmp.ne.s32.totalorder %s159, %s161
      %p165 = scmp.eq.s32.totalorder %s26, 0
      %p166 = por %p164, %p165
      %p167 = scmp.ne.s32.totalorder %s159, %s161
      %p168 = scmp.eq.s32.totalorder %s31, 1
      %p169 = por %p167, %p168
      %p170 = scmp.ne.s32.totalorder %s161, %s162
      %p171 = scmp.eq.s32.totalorder %s31, 0
      %p172 = por %p170, %p171
      %p173 = scmp.ne.s32.totalorder %s161, %s162
      %p174 = scmp.eq.s32.totalorder %s32, 1
      %p175 = por %p173, %p174
      %p177 = scmp.ne.s32.totalorder %s162, %s176
      %p178 = scmp.eq.s32.totalorder %s32, 0
      %p179 = por %p177, %p178
      %s180 = ssub.s32 %s26, %s33
      %p181 = scmp.eq.s32.totalorder %s180, 0
      %s183 = sadd.s32 %s182, 1
      %s184 = scalar_select %p181, %s182, %s183
      %p187 = pneg %p181
      %p188 = scmp.eq.s32.totalorder %s26, 1
      %p189 = por %p187, %p188
      %p190 = scmp.ne.s32.totalorder %s182, %s185
      %p191 = scmp.eq.s32.totalorder %s26, 0
      %p192 = por %p190, %p191
      %p193 = scmp.ne.s32.totalorder %s182, %s185
      %p194 = scmp.eq.s32.totalorder %s31, 1
      %p195 = por %p193, %p194
      %p196 = scmp.ne.s32.totalorder %s185, %s186
      %p197 = scmp.eq.s32.totalorder %s31, 0
      %p198 = por %p196, %p197
      %p199 = scmp.ne.s32.totalorder %s185, %s186
      %p200 = scmp.eq.s32.totalorder %s32, 1
      %p201 = por %p199, %p200
      %p203 = scmp.ne.s32.totalorder %s186, %s202
      %p204 = scmp.eq.s32.totalorder %s32, 0
      %p205 = por %p203, %p204
      %s206 = ssub.s32 %s26, %s33
      %p207 = scmp.eq.s32.totalorder %s206, 0
      %s209 = sadd.s32 %s208, 1
      %s210 = scalar_select %p207, %s208, %s209
      %p213 = pneg %p207
      %p214 = scmp.eq.s32.totalorder %s26, 1
      %p215 = por %p213, %p214
      %p216 = scmp.ne.s32.totalorder %s208, %s211
      %p217 = scmp.eq.s32.totalorder %s26, 0
      %p218 = por %p216, %p217
      %p219 = scmp.ne.s32.totalorder %s208, %s211
      %p220 = scmp.eq.s32.totalorder %s31, 1
      %p221 = por %p219, %p220
      %p222 = scmp.ne.s32.totalorder %s211, %s212
      %p223 = scmp.eq.s32.totalorder %s31, 0
      %p224 = por %p222, %p223
      %p225 = scmp.ne.s32.totalorder %s211, %s212
      %p226 = scmp.eq.s32.totalorder %s32, 1
      %p227 = por %p225, %p226
      %p229 = scmp.ne.s32.totalorder %s212, %s228
      %p230 = scmp.eq.s32.totalorder %s32, 0
      %p231 = por %p229, %p230
      %p232 = scmp.le.s32.totalorder 1, %s26
      %p233 = scmp.lt.s32.totalorder %s26, 3
      %p234 = pnand %p232, %p233
      %p235 = pneg %p234
      // Predicated region
      $region9: #{tpu_custom_call.1} parent=5 // pred_check
        _
      $region10: #{tpu_custom_call.1} parent=5 // pred_check_branch
        %237 = sbr.rel (%p234) target = $region12
      $region11: #{tpu_custom_call.1} parent=5 // pred_region
        %s238 = ssub.s32 %s26, 1
        // Predicated region
        $region13: #{tpu_custom_call.1} parent=11 // pred_check
          %p239 = pneg %p151
        $region14: #{tpu_custom_call.1} parent=11 // pred_check_branch
          %241 = sbr.rel (%p239) target = $region16
        $region15: #{tpu_custom_call.1} parent=11 // pred_region
          _
        $region16: #{tpu_custom_call.1} parent=11 // pred_fallthru
          _
        // Predicated region
        $region17: #{tpu_custom_call.1} parent=11 // pred_check
          %p242 = pneg %p172
        $region18: #{tpu_custom_call.1} parent=11 // pred_check_branch
          %244 = sbr.rel (%p242) target = $region20
        $region19: #{tpu_custom_call.1} parent=11 // pred_region
          _
        $region20: #{tpu_custom_call.1} parent=11 // pred_fallthru
          _
      $region12: #{tpu_custom_call.1} parent=5 // pred_fallthru
        _
      %p245 = scmp.lt.s32.totalorder %s26, 2
      // Predicated region
      $region21: #{tpu_custom_call.1} parent=5 // pred_check
        %p246 = pneg %p245
      $region22: #{tpu_custom_call.1} parent=5 // pred_check_branch
        %248 = sbr.rel (%p246) target = $region24
      $region23: #{tpu_custom_call.1} parent=5 // pred_region
        // Predicated region
        $region25: #{tpu_custom_call.1} parent=23 // pred_check
          %p249 = pneg %p46
        $region26: #{tpu_custom_call.1} parent=23 // pred_check_branch
          %251 = sbr.rel (%p249) target = $region28
        $region27: #{tpu_custom_call.1} parent=23 // pred_region
          %s252 = smul.u32 4, %s26
          %p253 = scmp.lt.s32.totalorder %s252, 7
          %s254 = scalar_select %p253, %s252, 7
          %s255 = smul.addr %s254, 4
          %s256 = scalar_lea.vmem %s0, %s255
          %s257 = smul.u32 4, %s26
        $region28: #{tpu_custom_call.1} parent=23 // pred_fallthru
          _
        // Predicated region
        $region29: #{tpu_custom_call.1} parent=23 // pred_check
          %p258 = pneg %p72
        $region30: #{tpu_custom_call.1} parent=23 // pred_check_branch
          %260 = sbr.rel (%p258) target = $region32
        $region31: #{tpu_custom_call.1} parent=23 // pred_region
          %s261 = sand.u32 %s62, 1
          %s262 = scalar_lea.sflag [#allocation3], %s261
          %s263 = sand.u32 %s62, 1
          %s264 = smul.addr %s263, 16
          %s265 = scalar_lea.vmem [#allocation2], %s264
          %s266 = smul.u32 4, %s26
          %s268 = ssub.s32 256, 256
          %269 = vsyncadd %s262, %s268
          %s270 = smul.addr %s266, 64
          %s271 = scalar_lea.hbm %s1, %s270
          %s272 = sshll.u32 %s265, 4
          %s273 = int_to_ptr.vmem [resolvable:$true] %s272
          %278 = dma.hbm_to_vmem [thread:$0]  %s271, 256, %s273, %s262, 64, 64, 4
        $region32: #{tpu_custom_call.1} parent=23 // pred_fallthru
          _
        // Predicated region
        $region33: #{tpu_custom_call.1} parent=23 // pred_check
          %p279 = pneg %p98
        $region34: #{tpu_custom_call.1} parent=23 // pred_check_branch
          %281 = sbr.rel (%p279) target = $region36
        $region35: #{tpu_custom_call.1} parent=23 // pred_region
          %s282 = sand.u32 %s26, 1
          %s283 = scalar_lea.sflag [#allocation6], %s282
          %s284 = sand.u32 %s88, 1
          %s285 = smul.addr %s284, 16
          %s286 = scalar_lea.vmem [#allocation5], %s285
          %s287 = smul.u32 4, %s26
          %s289 = ssub.s32 256, 256
          %290 = vsyncadd %s283, %s289
          %s291 = smul.addr %s287, 64
          %s292 = scalar_lea.hbm %s2, %s291
          %s293 = sshll.u32 %s286, 4
          %s294 = int_to_ptr.vmem [resolvable:$true] %s293
          %299 = dma.hbm_to_vmem [thread:$0]  %s292, 256, %s294, %s283, 64, 64, 4
        $region36: #{tpu_custom_call.1} parent=23 // pred_fallthru
          _
        // Predicated region
        $region37: #{tpu_custom_call.1} parent=23 // pred_check
          %p300 = pneg %p124
        $region38: #{tpu_custom_call.1} parent=23 // pred_check_branch
          %302 = sbr.rel (%p300) target = $region40
        $region39: #{tpu_custom_call.1} parent=23 // pred_region
          %s303 = sand.u32 %s26, 1
          %s304 = scalar_lea.sflag [#allocation6], %s303
          %s305 = sand.u32 %s114, 1
          %s306 = smul.addr %s305, 16
          %s307 = scalar_lea.vmem [#allocation7], %s306
          %s308 = smul.u32 4, %s26
          %s310 = ssub.s32 256, 256
          %311 = vsyncadd %s304, %s310
          %s312 = smul.addr %s308, 64
          %s313 = scalar_lea.hbm %s3, %s312
          %s314 = sshll.u32 %s307, 4
          %s315 = int_to_ptr.vmem [resolvable:$true] %s314
          %320 = dma.hbm_to_vmem [thread:$0]  %s313, 256, %s315, %s304, 64, 64, 4
        $region40: #{tpu_custom_call.1} parent=23 // pred_fallthru
          _
      $region24: #{tpu_custom_call.1} parent=5 // pred_fallthru
        _
      %p321 = scmp.le.s32.totalorder 1, %s26
      %p322 = scmp.lt.s32.totalorder %s26, 3
      %p323 = pnand %p321, %p322
      %p324 = pneg %p323
      // Predicated region
      $region41: #{tpu_custom_call.1} parent=5 // pred_check
        _
      $region42: #{tpu_custom_call.1} parent=5 // pred_check_branch
        %326 = sbr.rel (%p323) target = $region44
      $region43: #{tpu_custom_call.1} parent=5 // pred_region
        %s327 = ssub.s32 %s26, 1
        %s328 = sand.u32 %s65, 1
        %s329 = scalar_lea.sflag [#allocation3], %s328
        %s330 = sand.u32 %s65, 1
        %s331 = smul.addr %s330, 16
        %s332 = scalar_lea.vmem [#allocation2], %s331
        // Predicated region
        $region45: #{tpu_custom_call.1} parent=43 // pred_check
          %p333 = pneg %p78
        $region46: #{tpu_custom_call.1} parent=43 // pred_check_branch
          %335 = sbr.rel (%p333) target = $region48
        $region47: #{tpu_custom_call.1} parent=43 // pred_region
          %336 = dma.done %s329, 256
        $region48: #{tpu_custom_call.1} parent=43 // pred_fallthru
          _
        %s337 = sand.u32 %s31, 1
        %s338 = scalar_lea.sflag [#allocation6], %s337
        %s339 = sand.u32 %s91, 1
        %s340 = smul.addr %s339, 16
        %s341 = scalar_lea.vmem [#allocation5], %s340
        // Predicated region
        $region49: #{tpu_custom_call.1} parent=43 // pred_check
          %p342 = pneg %p104
        $region50: #{tpu_custom_call.1} parent=43 // pred_check_branch
          %344 = sbr.rel (%p342) target = $region52
        $region51: #{tpu_custom_call.1} parent=43 // pred_region
          %345 = dma.done %s338, 256
        $region52: #{tpu_custom_call.1} parent=43 // pred_fallthru
          _
        %s346 = sand.u32 %s31, 1
        %s347 = scalar_lea.sflag [#allocation6], %s346
        %s348 = sand.u32 %s117, 1
        %s349 = smul.addr %s348, 16
        %s350 = scalar_lea.vmem [#allocation7], %s349
        // Predicated region
        $region53: #{tpu_custom_call.1} parent=43 // pred_check
          %p351 = pneg %p130
        $region54: #{tpu_custom_call.1} parent=43 // pred_check_branch
          %353 = sbr.rel (%p351) target = $region56
        $region55: #{tpu_custom_call.1} parent=43 // pred_region
          %354 = dma.done %s347, 256
        $region56: #{tpu_custom_call.1} parent=43 // pred_fallthru
          _
        %s355 = smul.u32 4, %s31
        %p356 = scmp.lt.s32.totalorder %s355, 7
        %s357 = scalar_select %p356, %s355, 7
        %s358 = smul.addr %s357, 4
        %s359 = scalar_lea.vmem %s0, %s358
        %p360 = pneg %p52
        %p361 = pneg %p49
        %s362 = sand.u32 %s65, 1
        %s363 = scalar_lea.sflag [#allocation3], %s362
        %s364 = sand.u32 %s65, 1
        %s365 = smul.addr %s364, 16
        %s366 = scalar_lea.vmem [#allocation2], %s365
        %p367 = pneg %p78
        %p368 = pneg %p75
        %s369 = sand.u32 %s31, 1
        %s370 = scalar_lea.sflag [#allocation6], %s369
        %s371 = sand.u32 %s91, 1
        %s372 = smul.addr %s371, 16
        %s373 = scalar_lea.vmem [#allocation5], %s372
        %p374 = pneg %p104
        %p375 = pneg %p101
        %s376 = sand.u32 %s31, 1
        %s377 = scalar_lea.sflag [#allocation6], %s376
        %s378 = sand.u32 %s117, 1
        %s379 = smul.addr %s378, 16
        %s380 = scalar_lea.vmem [#allocation7], %s379
        %p381 = pneg %p130
        %p382 = pneg %p127
        %p383 = pneg %p151
        %p384 = pneg %p148
        %p385 = pneg %p172
        %p386 = pneg %p169
        %p387 = pneg %p198
        %p388 = pneg %p195
        %s389 = sand.u32 %s185, 1
        %s390 = scalar_lea.sflag [#allocation4], %s389
        %s391 = sand.u32 %s185, 1
        %s392 = smul.addr %s391, 32
        %s393 = scalar_lea.vmem [#allocation8], %s392
        %p394 = pneg %p224
        %p395 = pneg %p221
        %s396 = sand.u32 %s211, 1
        %s397 = scalar_lea.sflag [#allocation10], %s396
        %s398 = sand.u32 %s211, 1
        %s399 = smul.addr %s398, 32
        %s400 = scalar_lea.vmem [#allocation9], %s399
        %s401 = smul.u32 4, %s31
        %p402 = scmp.lt.s32.totalorder %s401, 7
        %s403 = scalar_select %p402, %s401, 7
        %s404 = smul.addr %s403, 4
        %s405 = scalar_lea.vmem %s0, %s404
        %s406 = smul.u32 4, %s31
        %s407 = smul.u32 4, %s31
        %s408 = smul.u32 4, %s31
        %s409 = smul.u32 4, %s31
        %v410 = vld [vmem:[%s405] sm:$0xf]
        %v411 = vld [vmem:[%s405 + $0x4] sm:$0xf]
        %v412 = vld [vmem:[%s405 + $0x8] sm:$0xf]
        %v413 = vld [vmem:[%s405 + $0xc] sm:$0xf]
        %v414 = vld [vmem:[%s332] sm:$0xf]
        %v415 = vld [vmem:[%s332 + $0x4] sm:$0xf]
        %v416 = vld [vmem:[%s332 + $0x8] sm:$0xf]
        %v417 = vld [vmem:[%s332 + $0xc] sm:$0xf]
        %vm418 = vcmask 64512
        %v420 = vsel %vm418, %v410, 0
        %v423 = vsel %vm418, %v414, 0
        %425 = vmatprep.subr.mxu0 0.0
        %426 = vmatpush1.xpose.msra.mxu0 %v423
        %427 = vmatprep.subr.mxu0 0.0
        %428 = vmatpush1.xpose.msra.mxu0 0.0
        %429 = vmatprep.subr.mxu0 0.0
        %430 = vmatpush1.xpose.msra.mxu0 0.0
        %431 = vmatprep.subr.mxu0 0.0
        %432 = vmatpush1.xpose.msra.mxu0 0.0
        %433 = vmatprep.subr.mxu0 0.0
        %434 = vmatpush1.xpose.msra.mxu0 0.0
        %435 = vmatprep.subr.mxu0 0.0
        %436 = vmatpush1.xpose.msra.mxu0 0.0
        %437 = vmatprep.subr.mxu0 0.0
        %438 = vmatpush1.xpose.msra.mxu0 0.0
        %439 = vmatprep.subr.mxu0 0.0
        %440 = vmatpush1.xpose.msra.mxu0 0.0
        %441 = vmatprep.subr.mxu0 0.0
        %442 = vmatpush1.xpose.msra.mxu0 0.0
        %443 = vmatprep.subr.mxu0 0.0
        %444 = vmatpush1.xpose.msra.mxu0 0.0
        %445 = vmatprep.subr.mxu0 0.0
        %446 = vmatpush1.xpose.msra.mxu0 0.0
        %447 = vmatprep.subr.mxu0 0.0
        %448 = vmatpush1.xpose.msra.mxu0 0.0
        %449 = vmatprep.subr.mxu0 0.0
        %450 = vmatpush1.xpose.msra.mxu0 0.0
        %451 = vmatprep.subr.mxu0 0.0
        %452 = vmatpush1.xpose.msra.mxu0 0.0
        %453 = vmatprep.subr.mxu0 0.0
        %454 = vmatpush1.xpose.msra.mxu0 0.0
        %455 = vmatprep.subr.mxu0 0.0
        %456 = vmatpush1.xpose.msra.mxu0 0.0
        %457 = vmatprep.subr.mxu0 0.0
        %458 = vmatpush1.xpose.msra.mxu0 0.0
        %459 = vmatprep.subr.mxu0 0.0
        %460 = vmatpush1.xpose.msra.mxu0 0.0
        %461 = vmatprep.subr.mxu0 0.0
        %462 = vmatpush1.xpose.msra.mxu0 0.0
        %463 = vmatprep.subr.mxu0 0.0
        %464 = vmatpush1.xpose.msra.mxu0 0.0
        %465 = vmatprep.subr.mxu0 0.0
        %466 = vmatpush1.xpose.msra.mxu0 0.0
        %467 = vmatprep.subr.mxu0 0.0
        %468 = vmatpush1.xpose.msra.mxu0 0.0
        %469 = vmatprep.subr.mxu0 0.0
        %470 = vmatpush1.xpose.msra.mxu0 0.0
        %471 = vmatprep.subr.mxu0 0.0
        %472 = vmatpush1.xpose.msra.mxu0 0.0
        %473 = vmatprep.subr.mxu0 0.0
        %474 = vmatpush1.xpose.msra.mxu0 0.0
        %475 = vmatprep.subr.mxu0 0.0
        %476 = vmatpush1.xpose.msra.mxu0 0.0
        %477 = vmatprep.subr.mxu0 0.0
        %478 = vmatpush1.xpose.msra.mxu0 0.0
        %479 = vmatprep.subr.mxu0 0.0
        %480 = vmatpush1.xpose.msra.mxu0 0.0
        %481 = vmatprep.subr.mxu0 0.0
        %482 = vmatpush1.xpose.msra.mxu0 0.0
        %483 = vmatprep.subr.mxu0 0.0
        %484 = vmatpush1.xpose.msra.mxu0 0.0
        %485 = vmatprep.subr.mxu0 0.0
        %486 = vmatpush1.xpose.msra.mxu0 0.0
        %487 = vmatprep.subr.mxu0 0.0
        %488 = vmatpush1.xpose.msra.mxu0 0.0
        %489 = vmatprep.mubr.f32.mxu0 0.0
        %490 = vmatmul.mubr.f32.gmra.mrb[0].mxu0 %v420
        %v491 = vpop.f32.mrb[0].mxu0
        %v492 = vadd.f32 0.0, %v491
        %v493 = vpop.f32.mrb[0].mxu0
        %494 = vdwg.mxu0
        %v496 = vsel %vm418, %v411, 0
        %v499 = vsel %vm418, %v415, 0
        %501 = vmatprep.subr.mxu0 0.0
        %502 = vmatpush1.xpose.msra.mxu0 %v499
        %503 = vmatprep.subr.mxu0 0.0
        %504 = vmatpush1.xpose.msra.mxu0 0.0
        %505 = vmatprep.subr.mxu0 0.0
        %506 = vmatpush1.xpose.msra.mxu0 0.0
        %507 = vmatprep.subr.mxu0 0.0
        %508 = vmatpush1.xpose.msra.mxu0 0.0
        %509 = vmatprep.subr.mxu0 0.0
        %510 = vmatpush1.xpose.msra.mxu0 0.0
        %511 = vmatprep.subr.mxu0 0.0
        %512 = vmatpush1.xpose.msra.mxu0 0.0
        %513 = vmatprep.subr.mxu0 0.0
        %514 = vmatpush1.xpose.msra.mxu0 0.0
        %515 = vmatprep.subr.mxu0 0.0
        %516 = vmatpush1.xpose.msra.mxu0 0.0
        %517 = vmatprep.subr.mxu0 0.0
        %518 = vmatpush1.xpose.msra.mxu0 0.0
        %519 = vmatprep.subr.mxu0 0.0
        %520 = vmatpush1.xpose.msra.mxu0 0.0
        %521 = vmatprep.subr.mxu0 0.0
        %522 = vmatpush1.xpose.msra.mxu0 0.0
        %523 = vmatprep.subr.mxu0 0.0
        %524 = vmatpush1.xpose.msra.mxu0 0.0
        %525 = vmatprep.subr.mxu0 0.0
        %526 = vmatpush1.xpose.msra.mxu0 0.0
        %527 = vmatprep.subr.mxu0 0.0
        %528 = vmatpush1.xpose.msra.mxu0 0.0
        %529 = vmatprep.subr.mxu0 0.0
        %530 = vmatpush1.xpose.msra.mxu0 0.0
        %531 = vmatprep.subr.mxu0 0.0
        %532 = vmatpush1.xpose.msra.mxu0 0.0
        %533 = vmatprep.subr.mxu0 0.0
        %534 = vmatpush1.xpose.msra.mxu0 0.0
        %535 = vmatprep.subr.mxu0 0.0
        %536 = vmatpush1.xpose.msra.mxu0 0.0
        %537 = vmatprep.subr.mxu0 0.0
        %538 = vmatpush1.xpose.msra.mxu0 0.0
        %539 = vmatprep.subr.mxu0 0.0
        %540 = vmatpush1.xpose.msra.mxu0 0.0
        %541 = vmatprep.subr.mxu0 0.0
        %542 = vmatpush1.xpose.msra.mxu0 0.0
        %543 = vmatprep.subr.mxu0 0.0
        %544 = vmatpush1.xpose.msra.mxu0 0.0
        %545 = vmatprep.subr.mxu0 0.0
        %546 = vmatpush1.xpose.msra.mxu0 0.0
        %547 = vmatprep.subr.mxu0 0.0
        %548 = vmatpush1.xpose.msra.mxu0 0.0
        %549 = vmatprep.subr.mxu0 0.0
        %550 = vmatpush1.xpose.msra.mxu0 0.0
        %551 = vmatprep.subr.mxu0 0.0
        %552 = vmatpush1.xpose.msra.mxu0 0.0
        %553 = vmatprep.subr.mxu0 0.0
        %554 = vmatpush1.xpose.msra.mxu0 0.0
        %555 = vmatprep.subr.mxu0 0.0
        %556 = vmatpush1.xpose.msra.mxu0 0.0
        %557 = vmatprep.subr.mxu0 0.0
        %558 = vmatpush1.xpose.msra.mxu0 0.0
        %559 = vmatprep.subr.mxu0 0.0
        %560 = vmatpush1.xpose.msra.mxu0 0.0
        %561 = vmatprep.subr.mxu0 0.0
        %562 = vmatpush1.xpose.msra.mxu0 0.0
        %563 = vmatprep.subr.mxu0 0.0
        %564 = vmatpush1.xpose.msra.mxu0 0.0
        %565 = vmatprep.mubr.f32.mxu0 0.0
        %566 = vmatmul.mubr.f32.gmra.mrb[0].mxu0 %v496
        %v567 = vpop.f32.mrb[0].mxu0
        %v568 = vadd.f32 0.0, %v567
        %v569 = vpop.f32.mrb[0].mxu0
        %570 = vdwg.mxu0
        %v572 = vsel %vm418, %v412, 0
        %v575 = vsel %vm418, %v416, 0
        %577 = vmatprep.subr.mxu0 0.0
        %578 = vmatpush1.xpose.msra.mxu0 %v575
        %579 = vmatprep.subr.mxu0 0.0
        %580 = vmatpush1.xpose.msra.mxu0 0.0
        %581 = vmatprep.subr.mxu0 0.0
        %582 = vmatpush1.xpose.msra.mxu0 0.0
        %583 = vmatprep.subr.mxu0 0.0
        %584 = vmatpush1.xpose.msra.mxu0 0.0
        %585 = vmatprep.subr.mxu0 0.0
        %586 = vmatpush1.xpose.msra.mxu0 0.0
        %587 = vmatprep.subr.mxu0 0.0
        %588 = vmatpush1.xpose.msra.mxu0 0.0
        %589 = vmatprep.subr.mxu0 0.0
        %590 = vmatpush1.xpose.msra.mxu0 0.0
        %591 = vmatprep.subr.mxu0 0.0
        %592 = vmatpush1.xpose.msra.mxu0 0.0
        %593 = vmatprep.subr.mxu0 0.0
        %594 = vmatpush1.xpose.msra.mxu0 0.0
        %595 = vmatprep.subr.mxu0 0.0
        %596 = vmatpush1.xpose.msra.mxu0 0.0
        %597 = vmatprep.subr.mxu0 0.0
        %598 = vmatpush1.xpose.msra.mxu0 0.0
        %599 = vmatprep.subr.mxu0 0.0
        %600 = vmatpush1.xpose.msra.mxu0 0.0
        %601 = vmatprep.subr.mxu0 0.0
        %602 = vmatpush1.xpose.msra.mxu0 0.0
        %603 = vmatprep.subr.mxu0 0.0
        %604 = vmatpush1.xpose.msra.mxu0 0.0
        %605 = vmatprep.subr.mxu0 0.0
        %606 = vmatpush1.xpose.msra.mxu0 0.0
        %607 = vmatprep.subr.mxu0 0.0
        %608 = vmatpush1.xpose.msra.mxu0 0.0
        %609 = vmatprep.subr.mxu0 0.0
        %610 = vmatpush1.xpose.msra.mxu0 0.0
        %611 = vmatprep.subr.mxu0 0.0
        %612 = vmatpush1.xpose.msra.mxu0 0.0
        %613 = vmatprep.subr.mxu0 0.0
        %614 = vmatpush1.xpose.msra.mxu0 0.0
        %615 = vmatprep.subr.mxu0 0.0
        %616 = vmatpush1.xpose.msra.mxu0 0.0
        %617 = vmatprep.subr.mxu0 0.0
        %618 = vmatpush1.xpose.msra.mxu0 0.0
        %619 = vmatprep.subr.mxu0 0.0
        %620 = vmatpush1.xpose.msra.mxu0 0.0
        %621 = vmatprep.subr.mxu0 0.0
        %622 = vmatpush1.xpose.msra.mxu0 0.0
        %623 = vmatprep.subr.mxu0 0.0
        %624 = vmatpush1.xpose.msra.mxu0 0.0
        %625 = vmatprep.subr.mxu0 0.0
        %626 = vmatpush1.xpose.msra.mxu0 0.0
        %627 = vmatprep.subr.mxu0 0.0
        %628 = vmatpush1.xpose.msra.mxu0 0.0
        %629 = vmatprep.subr.mxu0 0.0
        %630 = vmatpush1.xpose.msra.mxu0 0.0
        %631 = vmatprep.subr.mxu0 0.0
        %632 = vmatpush1.xpose.msra.mxu0 0.0
        %633 = vmatprep.subr.mxu0 0.0
        %634 = vmatpush1.xpose.msra.mxu0 0.0
        %635 = vmatprep.subr.mxu0 0.0
        %636 = vmatpush1.xpose.msra.mxu0 0.0
        %637 = vmatprep.subr.mxu0 0.0
        %638 = vmatpush1.xpose.msra.mxu0 0.0
        %639 = vmatprep.subr.mxu0 0.0
        %640 = vmatpush1.xpose.msra.mxu0 0.0
        %641 = vmatprep.mubr.f32.mxu0 0.0
        %642 = vmatmul.mubr.f32.gmra.mrb[0].mxu0 %v572
        %v643 = vpop.f32.mrb[0].mxu0
        %v644 = vadd.f32 0.0, %v643
        %v645 = vpop.f32.mrb[0].mxu0
        %646 = vdwg.mxu0
        %v648 = vsel %vm418, %v413, 0
        %v651 = vsel %vm418, %v417, 0
        %653 = vmatprep.subr.mxu0 0.0
        %654 = vmatpush1.xpose.msra.mxu0 %v651
        %655 = vmatprep.subr.mxu0 0.0
        %656 = vmatpush1.xpose.msra.mxu0 0.0
        %657 = vmatprep.subr.mxu0 0.0
        %658 = vmatpush1.xpose.msra.mxu0 0.0
        %659 = vmatprep.subr.mxu0 0.0
        %660 = vmatpush1.xpose.msra.mxu0 0.0
        %661 = vmatprep.subr.mxu0 0.0
        %662 = vmatpush1.xpose.msra.mxu0 0.0
        %663 = vmatprep.subr.mxu0 0.0
        %664 = vmatpush1.xpose.msra.mxu0 0.0
        %665 = vmatprep.subr.mxu0 0.0
        %666 = vmatpush1.xpose.msra.mxu0 0.0
        %667 = vmatprep.subr.mxu0 0.0
        %668 = vmatpush1.xpose.msra.mxu0 0.0
        %669 = vmatprep.subr.mxu0 0.0
        %670 = vmatpush1.xpose.msra.mxu0 0.0
        %671 = vmatprep.subr.mxu0 0.0
        %672 = vmatpush1.xpose.msra.mxu0 0.0
        %673 = vmatprep.subr.mxu0 0.0
        %674 = vmatpush1.xpose.msra.mxu0 0.0
        %675 = vmatprep.subr.mxu0 0.0
        %676 = vmatpush1.xpose.msra.mxu0 0.0
        %677 = vmatprep.subr.mxu0 0.0
        %678 = vmatpush1.xpose.msra.mxu0 0.0
        %679 = vmatprep.subr.mxu0 0.0
        %680 = vmatpush1.xpose.msra.mxu0 0.0
        %681 = vmatprep.subr.mxu0 0.0
        %682 = vmatpush1.xpose.msra.mxu0 0.0
        %683 = vmatprep.subr.mxu0 0.0
        %684 = vmatpush1.xpose.msra.mxu0 0.0
        %685 = vmatprep.subr.mxu0 0.0
        %686 = vmatpush1.xpose.msra.mxu0 0.0
        %687 = vmatprep.subr.mxu0 0.0
        %688 = vmatpush1.xpose.msra.mxu0 0.0
        %689 = vmatprep.subr.mxu0 0.0
        %690 = vmatpush1.xpose.msra.mxu0 0.0
        %691 = vmatprep.subr.mxu0 0.0
        %692 = vmatpush1.xpose.msra.mxu0 0.0
        %693 = vmatprep.subr.mxu0 0.0
        %694 = vmatpush1.xpose.msra.mxu0 0.0
        %695 = vmatprep.subr.mxu0 0.0
        %696 = vmatpush1.xpose.msra.mxu0 0.0
        %697 = vmatprep.subr.mxu0 0.0
        %698 = vmatpush1.xpose.msra.mxu0 0.0
        %699 = vmatprep.subr.mxu0 0.0
        %700 = vmatpush1.xpose.msra.mxu0 0.0
        %701 = vmatprep.subr.mxu0 0.0
        %702 = vmatpush1.xpose.msra.mxu0 0.0
        %703 = vmatprep.subr.mxu0 0.0
        %704 = vmatpush1.xpose.msra.mxu0 0.0
        %705 = vmatprep.subr.mxu0 0.0
        %706 = vmatpush1.xpose.msra.mxu0 0.0
        %707 = vmatprep.subr.mxu0 0.0
        %708 = vmatpush1.xpose.msra.mxu0 0.0
        %709 = vmatprep.subr.mxu0 0.0
        %710 = vmatpush1.xpose.msra.mxu0 0.0
        %711 = vmatprep.subr.mxu0 0.0
        %712 = vmatpush1.xpose.msra.mxu0 0.0
        %713 = vmatprep.subr.mxu0 0.0
        %714 = vmatpush1.xpose.msra.mxu0 0.0
        %715 = vmatprep.subr.mxu0 0.0
        %716 = vmatpush1.xpose.msra.mxu0 0.0
        %717 = vmatprep.mubr.f32.mxu0 0.0
        %718 = vmatmul.mubr.f32.gmra.mrb[0].mxu0 %v648
        %v719 = vpop.f32.mrb[0].mxu0
        %v720 = vadd.f32 0.0, %v719
        %v721 = vpop.f32.mrb[0].mxu0
        %722 = vdwg.mxu0
        %v723 = vmul.f32 %v492, 0.35355338
        %v724 = vmul.f32 %v568, 0.35355338
        %v725 = vmul.f32 %v644, 0.35355338
        %v726 = vmul.f32 %v720, 0.35355338
        %vm727 = vcmask 27648
        %v728 = vsel %vm727, %v723, -inf
        %729 = vmax.xlane.f32.xlu0 %v728
        %v730 = vpop.xlane.xlu0 %729
        %v731 = vsel %vm727, %v724, -inf
        %732 = vmax.xlane.f32.xlu0 %v731
        %v733 = vpop.xlane.xlu0 %732
        %v734 = vsel %vm727, %v725, -inf
        %735 = vmax.xlane.f32.xlu0 %v734
        %v736 = vpop.xlane.xlu0 %735
        %v737 = vsel %vm727, %v726, -inf
        %738 = vmax.xlane.f32.xlu0 %v737
        %v739 = vpop.xlane.xlu0 %738
        %v740 = vsub.f32 %v723, %v730
        %v741 = vsub.f32 %v724, %v733
        %v742 = vsub.f32 %v725, %v736
        %v743 = vsub.f32 %v726, %v739
        %v744 = vmul.f32 %v740, 1.442695
        %v745 = vpow.pop %v744
        %v746 = vmul.f32 %v741, 1.442695
        %v747 = vpow.pop %v746
        %v748 = vmul.f32 %v742, 1.442695
        %v749 = vpow.pop %v748
        %v750 = vmul.f32 %v743, 1.442695
        %v751 = vpow.pop %v750
        %v752 = vsel %vm727, %v745, 0.0
        %753 = vadd.xlane.f32.xlu0 %v752
        %v754 = vpop.xlane.xlu0 %753
        %v755 = vsel %vm727, %v747, 0.0
        %756 = vadd.xlane.f32.xlu0 %v755
        %v757 = vpop.xlane.xlu0 %756
        %v758 = vsel %vm727, %v749, 0.0
        %759 = vadd.xlane.f32.xlu0 %v758
        %v760 = vpop.xlane.xlu0 %759
        %v761 = vsel %vm727, %v751, 0.0
        %762 = vadd.xlane.f32.xlu0 %v761
        %v763 = vpop.xlane.xlu0 %762
        %v764 = vrcp.pop %v754
        %v765 = vmul.f32 %v745, %v764
        %v766 = vrcp.pop %v757
        %v767 = vmul.f32 %v747, %v766
        %v768 = vrcp.pop %v760
        %v769 = vmul.f32 %v749, %v768
        %v770 = vrcp.pop %v763
        %v771 = vmul.f32 %v751, %v770
        %v772 = vsel %vm727, %v765, 0.0
        %v773 = vsel %vm727, %v769, 0.0
        %v774 = vadd.f32 %v772, %v773
        %v775 = vsel %vm727, %v767, 0.0
        %v776 = vsel %vm727, %v771, 0.0
        %v777 = vadd.f32 %v775, %v776
        %v778 = vmul.f32 %v774, 0.5
        %v779 = vmul.f32 %v777, 0.5
        %v780 = vld [vmem:[%s4] sm:$0xff]
        %v781 = vld [vmem:[%s4 + $0x8] sm:$0xff]
        %vm782 = vcmask 31744
        %v784 = vsel %vm782, %v780, 0
        %v787 = vsel %vm782, %v781, 0
        %vm789 = vcmask 1043456
        %v791 = vsel %vm789, %v778, 0
        %793 = vmatprep.subr.mxu0 0.0
        %794 = vmatpush1.msra.mxu0 %v791
        %795 = vmatprep.subr.mxu0 0.0
        %796 = vmatpush1.msra.mxu0 0.0
        %797 = vmatprep.subr.mxu0 0.0
        %798 = vmatpush1.msra.mxu0 0.0
        %799 = vmatprep.subr.mxu0 0.0
        %800 = vmatpush1.msra.mxu0 0.0
        %801 = vmatprep.subr.mxu0 0.0
        %802 = vmatpush1.msra.mxu0 0.0
        %803 = vmatprep.subr.mxu0 0.0
        %804 = vmatpush1.msra.mxu0 0.0
        %805 = vmatprep.subr.mxu0 0.0
        %806 = vmatpush1.msra.mxu0 0.0
        %807 = vmatprep.subr.mxu0 0.0
        %808 = vmatpush1.msra.mxu0 0.0
        %809 = vmatprep.subr.mxu0 0.0
        %810 = vmatpush1.msra.mxu0 0.0
        %811 = vmatprep.subr.mxu0 0.0
        %812 = vmatpush1.msra.mxu0 0.0
        %813 = vmatprep.subr.mxu0 0.0
        %814 = vmatpush1.msra.mxu0 0.0
        %815 = vmatprep.subr.mxu0 0.0
        %816 = vmatpush1.msra.mxu0 0.0
        %817 = vmatprep.subr.mxu0 0.0
        %818 = vmatpush1.msra.mxu0 0.0
        %819 = vmatprep.subr.mxu0 0.0
        %820 = vmatpush1.msra.mxu0 0.0
        %821 = vmatprep.subr.mxu0 0.0
        %822 = vmatpush1.msra.mxu0 0.0
        %823 = vmatprep.subr.mxu0 0.0
        %824 = vmatpush1.msra.mxu0 0.0
        %825 = vmatprep.subr.mxu0 0.0
        %826 = vmatpush1.msra.mxu0 0.0
        %827 = vmatprep.subr.mxu0 0.0
        %828 = vmatpush1.msra.mxu0 0.0
        %829 = vmatprep.subr.mxu0 0.0
        %830 = vmatpush1.msra.mxu0 0.0
        %831 = vmatprep.subr.mxu0 0.0
        %832 = vmatpush1.msra.mxu0 0.0
        %833 = vmatprep.subr.mxu0 0.0
        %834 = vmatpush1.msra.mxu0 0.0
        %835 = vmatprep.subr.mxu0 0.0
        %836 = vmatpush1.msra.mxu0 0.0
        %837 = vmatprep.subr.mxu0 0.0
        %838 = vmatpush1.msra.mxu0 0.0
        %839 = vmatprep.subr.mxu0 0.0
        %840 = vmatpush1.msra.mxu0 0.0
        %841 = vmatprep.subr.mxu0 0.0
        %842 = vmatpush1.msra.mxu0 0.0
        %843 = vmatprep.subr.mxu0 0.0
        %844 = vmatpush1.msra.mxu0 0.0
        %845 = vmatprep.subr.mxu0 0.0
        %846 = vmatpush1.msra.mxu0 0.0
        %847 = vmatprep.subr.mxu0 0.0
        %848 = vmatpush1.msra.mxu0 0.0
        %849 = vmatprep.subr.mxu0 0.0
        %850 = vmatpush1.msra.mxu0 0.0
        %851 = vmatprep.subr.mxu0 0.0
        %852 = vmatpush1.msra.mxu0 0.0
        %853 = vmatprep.subr.mxu0 0.0
        %854 = vmatpush1.msra.mxu0 0.0
        %855 = vmatprep.subr.mxu0 0.0
        %856 = vmatpush1.msra.mxu0 0.0
        %857 = vmatprep.mubr.f32.mxu0 0.0
        %858 = vmatmul.mubr.f32.gmra.mrb[0].mxu0 %v784
        %v859 = vpop.f32.mrb[0].mxu0
        %v860 = vadd.f32 0.0, %v859
        %v861 = vpop.f32.mrb[0].mxu0
        %862 = vmatprep.mubr.f32.mxu0 0.0
        %863 = vmatmul.mubr.f32.gmra.mrb[0].mxu0 %v787
        %v864 = vpop.f32.mrb[0].mxu0
        %v865 = vadd.f32 0.0, %v864
        %v866 = vpop.f32.mrb[0].mxu0
        %867 = vdwg.mxu0
        %v869 = vsel %vm782, %v860, 0
        %v872 = vsel %vm782, %v865, 0
        %874 = vmatprep.subr.mxu0 0.0
        %875 = vmatpush1.xpose.msra.mxu0 %v784
        %876 = vmatprep.subr.mxu0 0.0
        %877 = vmatpush1.xpose.msra.mxu0 %v787
        %878 = vmatprep.subr.mxu0 0.0
        %879 = vmatpush1.xpose.msra.mxu0 0.0
        %880 = vmatprep.subr.mxu0 0.0
        %881 = vmatpush1.xpose.msra.mxu0 0.0
        %882 = vmatprep.subr.mxu0 0.0
        %883 = vmatpush1.xpose.msra.mxu0 0.0
        %884 = vmatprep.subr.mxu0 0.0
        %885 = vmatpush1.xpose.msra.mxu0 0.0
        %886 = vmatprep.subr.mxu0 0.0
        %887 = vmatpush1.xpose.msra.mxu0 0.0
        %888 = vmatprep.subr.mxu0 0.0
        %889 = vmatpush1.xpose.msra.mxu0 0.0
        %890 = vmatprep.subr.mxu0 0.0
        %891 = vmatpush1.xpose.msra.mxu0 0.0
        %892 = vmatprep.subr.mxu0 0.0
        %893 = vmatpush1.xpose.msra.mxu0 0.0
        %894 = vmatprep.subr.mxu0 0.0
        %895 = vmatpush1.xpose.msra.mxu0 0.0
        %896 = vmatprep.subr.mxu0 0.0
        %897 = vmatpush1.xpose.msra.mxu0 0.0
        %898 = vmatprep.subr.mxu0 0.0
        %899 = vmatpush1.xpose.msra.mxu0 0.0
        %900 = vmatprep.subr.mxu0 0.0
        %901 = vmatpush1.xpose.msra.mxu0 0.0
        %902 = vmatprep.subr.mxu0 0.0
        %903 = vmatpush1.xpose.msra.mxu0 0.0
        %904 = vmatprep.subr.mxu0 0.0
        %905 = vmatpush1.xpose.msra.mxu0 0.0
        %906 = vmatprep.subr.mxu0 0.0
        %907 = vmatpush1.xpose.msra.mxu0 0.0
        %908 = vmatprep.subr.mxu0 0.0
        %909 = vmatpush1.xpose.msra.mxu0 0.0
        %910 = vmatprep.subr.mxu0 0.0
        %911 = vmatpush1.xpose.msra.mxu0 0.0
        %912 = vmatprep.subr.mxu0 0.0
        %913 = vmatpush1.xpose.msra.mxu0 0.0
        %914 = vmatprep.subr.mxu0 0.0
        %915 = vmatpush1.xpose.msra.mxu0 0.0
        %916 = vmatprep.subr.mxu0 0.0
        %917 = vmatpush1.xpose.msra.mxu0 0.0
        %918 = vmatprep.subr.mxu0 0.0
        %919 = vmatpush1.xpose.msra.mxu0 0.0
        %920 = vmatprep.subr.mxu0 0.0
        %921 = vmatpush1.xpose.msra.mxu0 0.0
        %922 = vmatprep.subr.mxu0 0.0
        %923 = vmatpush1.xpose.msra.mxu0 0.0
        %924 = vmatprep.subr.mxu0 0.0
        %925 = vmatpush1.xpose.msra.mxu0 0.0
        %926 = vmatprep.subr.mxu0 0.0
        %927 = vmatpush1.xpose.msra.mxu0 0.0
        %928 = vmatprep.subr.mxu0 0.0
        %929 = vmatpush1.xpose.msra.mxu0 0.0
        %930 = vmatprep.subr.mxu0 0.0
        %931 = vmatpush1.xpose.msra.mxu0 0.0
        %932 = vmatprep.subr.mxu0 0.0
        %933 = vmatpush1.xpose.msra.mxu0 0.0
        %934 = vmatprep.subr.mxu0 0.0
        %935 = vmatpush1.xpose.msra.mxu0 0.0
        %936 = vmatprep.subr.mxu0 0.0
        %937 = vmatpush1.xpose.msra.mxu0 0.0
        %938 = vmatprep.mubr.f32.mxu0 0.0
        %939 = vmatmul.mubr.f32.gmra.mrb[0].mxu0 %v869
        %v940 = vpop.f32.mrb[0].mxu0
        %v941 = vadd.f32 0.0, %v940
        %v942 = vpop.f32.mrb[0].mxu0
        %943 = vmatprep.mubr.f32.mxu0 0.0
        %944 = vmatmul.mubr.f32.gmra.mrb[0].mxu0 %v872
        %v945 = vpop.f32.mrb[0].mxu0
        %v946 = vadd.f32 0.0, %v945
        %v947 = vpop.f32.mrb[0].mxu0
        %948 = vdwg.mxu0
        %vm949 = vcmask 130048
        %950 = vst.msk [vmem:[%s393] sm:$0xff] %vm949, %v941
        %951 = vst.msk [vmem:[%s393 + $0x8] sm:$0xff] %vm949, %v946
        %v953 = vsel %vm789, %v779, 0
        %955 = vmatprep.subr.mxu0 0.0
        %956 = vmatpush1.msra.mxu0 %v953
        %957 = vmatprep.subr.mxu0 0.0
        %958 = vmatpush1.msra.mxu0 0.0
        %959 = vmatprep.subr.mxu0 0.0
        %960 = vmatpush1.msra.mxu0 0.0
        %961 = vmatprep.subr.mxu0 0.0
        %962 = vmatpush1.msra.mxu0 0.0
        %963 = vmatprep.subr.mxu0 0.0
        %964 = vmatpush1.msra.mxu0 0.0
        %965 = vmatprep.subr.mxu0 0.0
        %966 = vmatpush1.msra.mxu0 0.0
        %967 = vmatprep.subr.mxu0 0.0
        %968 = vmatpush1.msra.mxu0 0.0
        %969 = vmatprep.subr.mxu0 0.0
        %970 = vmatpush1.msra.mxu0 0.0
        %971 = vmatprep.subr.mxu0 0.0
        %972 = vmatpush1.msra.mxu0 0.0
        %973 = vmatprep.subr.mxu0 0.0
        %974 = vmatpush1.msra.mxu0 0.0
        %975 = vmatprep.subr.mxu0 0.0
        %976 = vmatpush1.msra.mxu0 0.0
        %977 = vmatprep.subr.mxu0 0.0
        %978 = vmatpush1.msra.mxu0 0.0
        %979 = vmatprep.subr.mxu0 0.0
        %980 = vmatpush1.msra.mxu0 0.0
        %981 = vmatprep.subr.mxu0 0.0
        %982 = vmatpush1.msra.mxu0 0.0
        %983 = vmatprep.subr.mxu0 0.0
        %984 = vmatpush1.msra.mxu0 0.0
        %985 = vmatprep.subr.mxu0 0.0
        %986 = vmatpush1.msra.mxu0 0.0
        %987 = vmatprep.subr.mxu0 0.0
        %988 = vmatpush1.msra.mxu0 0.0
        %989 = vmatprep.subr.mxu0 0.0
        %990 = vmatpush1.msra.mxu0 0.0
        %991 = vmatprep.subr.mxu0 0.0
        %992 = vmatpush1.msra.mxu0 0.0
        %993 = vmatprep.subr.mxu0 0.0
        %994 = vmatpush1.msra.mxu0 0.0
        %995 = vmatprep.subr.mxu0 0.0
        %996 = vmatpush1.msra.mxu0 0.0
        %997 = vmatprep.subr.mxu0 0.0
        %998 = vmatpush1.msra.mxu0 0.0
        %999 = vmatprep.subr.mxu0 0.0
        %1000 = vmatpush1.msra.mxu0 0.0
        %1001 = vmatprep.subr.mxu0 0.0
        %1002 = vmatpush1.msra.mxu0 0.0
        %1003 = vmatprep.subr.mxu0 0.0
        %1004 = vmatpush1.msra.mxu0 0.0
        %1005 = vmatprep.subr.mxu0 0.0
        %1006 = vmatpush1.msra.mxu0 0.0
        %1007 = vmatprep.subr.mxu0 0.0
        %1008 = vmatpush1.msra.mxu0 0.0
        %1009 = vmatprep.subr.mxu0 0.0
        %1010 = vmatpush1.msra.mxu0 0.0
        %1011 = vmatprep.subr.mxu0 0.0
        %1012 = vmatpush1.msra.mxu0 0.0
        %1013 = vmatprep.subr.mxu0 0.0
        %1014 = vmatpush1.msra.mxu0 0.0
        %1015 = vmatprep.subr.mxu0 0.0
        %1016 = vmatpush1.msra.mxu0 0.0
        %1017 = vmatprep.subr.mxu0 0.0
        %1018 = vmatpush1.msra.mxu0 0.0
        %1019 = vmatprep.mubr.f32.mxu0 0.0
        %1020 = vmatmul.mubr.f32.gmra.mrb[0].mxu0 %v784
        %v1021 = vpop.f32.mrb[0].mxu0
        %v1022 = vadd.f32 0.0, %v1021
        %v1023 = vpop.f32.mrb[0].mxu0
        %1024 = vmatprep.mubr.f32.mxu0 0.0
        %1025 = vmatmul.mubr.f32.gmra.mrb[0].mxu0 %v787
        %v1026 = vpop.f32.mrb[0].mxu0
        %v1027 = vadd.f32 0.0, %v1026
        %v1028 = vpop.f32.mrb[0].mxu0
        %1029 = vdwg.mxu0
        %v1031 = vsel %vm782, %v1022, 0
        %v1034 = vsel %vm782, %v1027, 0
        %1036 = vmatprep.subr.mxu0 0.0
        %1037 = vmatpush1.xpose.msra.mxu0 %v784
        %1038 = vmatprep.subr.mxu0 0.0
        %1039 = vmatpush1.xpose.msra.mxu0 %v787
        %1040 = vmatprep.subr.mxu0 0.0
        %1041 = vmatpush1.xpose.msra.mxu0 0.0
        %1042 = vmatprep.subr.mxu0 0.0
        %1043 = vmatpush1.xpose.msra.mxu0 0.0
        %1044 = vmatprep.subr.mxu0 0.0
        %1045 = vmatpush1.xpose.msra.mxu0 0.0
        %1046 = vmatprep.subr.mxu0 0.0
        %1047 = vmatpush1.xpose.msra.mxu0 0.0
        %1048 = vmatprep.subr.mxu0 0.0
        %1049 = vmatpush1.xpose.msra.mxu0 0.0
        %1050 = vmatprep.subr.mxu0 0.0
        %1051 = vmatpush1.xpose.msra.mxu0 0.0
        %1052 = vmatprep.subr.mxu0 0.0
        %1053 = vmatpush1.xpose.msra.mxu0 0.0
        %1054 = vmatprep.subr.mxu0 0.0
        %1055 = vmatpush1.xpose.msra.mxu0 0.0
        %1056 = vmatprep.subr.mxu0 0.0
        %1057 = vmatpush1.xpose.msra.mxu0 0.0
        %1058 = vmatprep.subr.mxu0 0.0
        %1059 = vmatpush1.xpose.msra.mxu0 0.0
        %1060 = vmatprep.subr.mxu0 0.0
        %1061 = vmatpush1.xpose.msra.mxu0 0.0
        %1062 = vmatprep.subr.mxu0 0.0
        %1063 = vmatpush1.xpose.msra.mxu0 0.0
        %1064 = vmatprep.subr.mxu0 0.0
        %1065 = vmatpush1.xpose.msra.mxu0 0.0
        %1066 = vmatprep.subr.mxu0 0.0
        %1067 = vmatpush1.xpose.msra.mxu0 0.0
        %1068 = vmatprep.subr.mxu0 0.0
        %1069 = vmatpush1.xpose.msra.mxu0 0.0
        %1070 = vmatprep.subr.mxu0 0.0
        %1071 = vmatpush1.xpose.msra.mxu0 0.0
        %1072 = vmatprep.subr.mxu0 0.0
        %1073 = vmatpush1.xpose.msra.mxu0 0.0
        %1074 = vmatprep.subr.mxu0 0.0
        %1075 = vmatpush1.xpose.msra.mxu0 0.0
        %1076 = vmatprep.subr.mxu0 0.0
        %1077 = vmatpush1.xpose.msra.mxu0 0.0
        %1078 = vmatprep.subr.mxu0 0.0
        %1079 = vmatpush1.xpose.msra.mxu0 0.0
        %1080 = vmatprep.subr.mxu0 0.0
        %1081 = vmatpush1.xpose.msra.mxu0 0.0
        %1082 = vmatprep.subr.mxu0 0.0
        %1083 = vmatpush1.xpose.msra.mxu0 0.0
        %1084 = vmatprep.subr.mxu0 0.0
        %1085 = vmatpush1.xpose.msra.mxu0 0.0
        %1086 = vmatprep.subr.mxu0 0.0
        %1087 = vmatpush1.xpose.msra.mxu0 0.0
        %1088 = vmatprep.subr.mxu0 0.0
        %1089 = vmatpush1.xpose.msra.mxu0 0.0
        %1090 = vmatprep.subr.mxu0 0.0
        %1091 = vmatpush1.xpose.msra.mxu0 0.0
        %1092 = vmatprep.subr.mxu0 0.0
        %1093 = vmatpush1.xpose.msra.mxu0 0.0
        %1094 = vmatprep.subr.mxu0 0.0
        %1095 = vmatpush1.xpose.msra.mxu0 0.0
        %1096 = vmatprep.subr.mxu0 0.0
        %1097 = vmatpush1.xpose.msra.mxu0 0.0
        %1098 = vmatprep.subr.mxu0 0.0
        %1099 = vmatpush1.xpose.msra.mxu0 0.0
        %1100 = vmatprep.mubr.f32.mxu0 0.0
        %1101 = vmatmul.mubr.f32.gmra.mrb[0].mxu0 %v1031
        %v1102 = vpop.f32.mrb[0].mxu0
        %v1103 = vadd.f32 0.0, %v1102
        %v1104 = vpop.f32.mrb[0].mxu0
        %1105 = vmatprep.mubr.f32.mxu0 0.0
        %1106 = vmatmul.mubr.f32.gmra.mrb[0].mxu0 %v1034
        %v1107 = vpop.f32.mrb[0].mxu0
        %v1108 = vadd.f32 0.0, %v1107
        %v1109 = vpop.f32.mrb[0].mxu0
        %1110 = vdwg.mxu0
        %s1111 = scalar_lea.vmem %s393, 16 [#allocation8]
        %1112 = vst.msk [vmem:[%s1111] sm:$0xff] %vm949, %v1103
        %1113 = vst.msk [vmem:[%s1111 + $0x8] sm:$0xff] %vm949, %v1108
        %v1114 = vld [vmem:[%s341] sm:$0xf]
        %v1115 = vld [vmem:[%s341 + $0x4] sm:$0xf]
        %v1116 = vld [vmem:[%s341 + $0x8] sm:$0xf]
        %v1117 = vld [vmem:[%s341 + $0xc] sm:$0xf]
        %v1118 = vld [vmem:[%s350] sm:$0xf]
        %v1119 = vld [vmem:[%s350 + $0x4] sm:$0xf]
        %v1120 = vld [vmem:[%s350 + $0x8] sm:$0xf]
        %v1121 = vld [vmem:[%s350 + $0xc] sm:$0xf]
        %v1123 = vsel %vm418, %v1114, 0
        %v1126 = vsel %vm418, %v1118, 0
        %1128 = vmatprep.subr.mxu0 0.0
        %1129 = vmatpush1.xpose.msra.mxu0 %v1126
        %1130 = vmatprep.subr.mxu0 0.0
        %1131 = vmatpush1.xpose.msra.mxu0 0.0
        %1132 = vmatprep.subr.mxu0 0.0
        %1133 = vmatpush1.xpose.msra.mxu0 0.0
        %1134 = vmatprep.subr.mxu0 0.0
        %1135 = vmatpush1.xpose.msra.mxu0 0.0
        %1136 = vmatprep.subr.mxu0 0.0
        %1137 = vmatpush1.xpose.msra.mxu0 0.0
        %1138 = vmatprep.subr.mxu0 0.0
        %1139 = vmatpush1.xpose.msra.mxu0 0.0
        %1140 = vmatprep.subr.mxu0 0.0
        %1141 = vmatpush1.xpose.msra.mxu0 0.0
        %1142 = vmatprep.subr.mxu0 0.0
        %1143 = vmatpush1.xpose.msra.mxu0 0.0
        %1144 = vmatprep.subr.mxu0 0.0
        %1145 = vmatpush1.xpose.msra.mxu0 0.0
        %1146 = vmatprep.subr.mxu0 0.0
        %1147 = vmatpush1.xpose.msra.mxu0 0.0
        %1148 = vmatprep.subr.mxu0 0.0
        %1149 = vmatpush1.xpose.msra.mxu0 0.0
        %1150 = vmatprep.subr.mxu0 0.0
        %1151 = vmatpush1.xpose.msra.mxu0 0.0
        %1152 = vmatprep.subr.mxu0 0.0
        %1153 = vmatpush1.xpose.msra.mxu0 0.0
        %1154 = vmatprep.subr.mxu0 0.0
        %1155 = vmatpush1.xpose.msra.mxu0 0.0
        %1156 = vmatprep.subr.mxu0 0.0
        %1157 = vmatpush1.xpose.msra.mxu0 0.0
        %1158 = vmatprep.subr.mxu0 0.0
        %1159 = vmatpush1.xpose.msra.mxu0 0.0
        %1160 = vmatprep.subr.mxu0 0.0
        %1161 = vmatpush1.xpose.msra.mxu0 0.0
        %1162 = vmatprep.subr.mxu0 0.0
        %1163 = vmatpush1.xpose.msra.mxu0 0.0
        %1164 = vmatprep.subr.mxu0 0.0
        %1165 = vmatpush1.xpose.msra.mxu0 0.0
        %1166 = vmatprep.subr.mxu0 0.0
        %1167 = vmatpush1.xpose.msra.mxu0 0.0
        %1168 = vmatprep.subr.mxu0 0.0
        %1169 = vmatpush1.xpose.msra.mxu0 0.0
        %1170 = vmatprep.subr.mxu0 0.0
        %1171 = vmatpush1.xpose.msra.mxu0 0.0
        %1172 = vmatprep.subr.mxu0 0.0
        %1173 = vmatpush1.xpose.msra.mxu0 0.0
        %1174 = vmatprep.subr.mxu0 0.0
        %1175 = vmatpush1.xpose.msra.mxu0 0.0
        %1176 = vmatprep.subr.mxu0 0.0
        %1177 = vmatpush1.xpose.msra.mxu0 0.0
        %1178 = vmatprep.subr.mxu0 0.0
        %1179 = vmatpush1.xpose.msra.mxu0 0.0
        %1180 = vmatprep.subr.mxu0 0.0
        %1181 = vmatpush1.xpose.msra.mxu0 0.0
        %1182 = vmatprep.subr.mxu0 0.0
        %1183 = vmatpush1.xpose.msra.mxu0 0.0
        %1184 = vmatprep.subr.mxu0 0.0
        %1185 = vmatpush1.xpose.msra.mxu0 0.0
        %1186 = vmatprep.subr.mxu0 0.0
        %1187 = vmatpush1.xpose.msra.mxu0 0.0
        %1188 = vmatprep.subr.mxu0 0.0
        %1189 = vmatpush1.xpose.msra.mxu0 0.0
        %1190 = vmatprep.subr.mxu0 0.0
        %1191 = vmatpush1.xpose.msra.mxu0 0.0
        %1192 = vmatprep.mubr.f32.mxu0 0.0
        %1193 = vmatmul.mubr.f32.gmra.mrb[0].mxu0 %v1123
        %v1194 = vpop.f32.mrb[0].mxu0
        %v1195 = vadd.f32 0.0, %v1194
        %v1196 = vpop.f32.mrb[0].mxu0
        %1197 = vdwg.mxu0
        %v1199 = vsel %vm418, %v1115, 0
        %v1202 = vsel %vm418, %v1119, 0
        %1204 = vmatprep.subr.mxu0 0.0
        %1205 = vmatpush1.xpose.msra.mxu0 %v1202
        %1206 = vmatprep.subr.mxu0 0.0
        %1207 = vmatpush1.xpose.msra.mxu0 0.0
        %1208 = vmatprep.subr.mxu0 0.0
        %1209 = vmatpush1.xpose.msra.mxu0 0.0
        %1210 = vmatprep.subr.mxu0 0.0
        %1211 = vmatpush1.xpose.msra.mxu0 0.0
        %1212 = vmatprep.subr.mxu0 0.0
        %1213 = vmatpush1.xpose.msra.mxu0 0.0
        %1214 = vmatprep.subr.mxu0 0.0
        %1215 = vmatpush1.xpose.msra.mxu0 0.0
        %1216 = vmatprep.subr.mxu0 0.0
        %1217 = vmatpush1.xpose.msra.mxu0 0.0
        %1218 = vmatprep.subr.mxu0 0.0
        %1219 = vmatpush1.xpose.msra.mxu0 0.0
        %1220 = vmatprep.subr.mxu0 0.0
        %1221 = vmatpush1.xpose.msra.mxu0 0.0
        %1222 = vmatprep.subr.mxu0 0.0
        %1223 = vmatpush1.xpose.msra.mxu0 0.0
        %1224 = vmatprep.subr.mxu0 0.0
        %1225 = vmatpush1.xpose.msra.mxu0 0.0
        %1226 = vmatprep.subr.mxu0 0.0
        %1227 = vmatpush1.xpose.msra.mxu0 0.0
        %1228 = vmatprep.subr.mxu0 0.0
        %1229 = vmatpush1.xpose.msra.mxu0 0.0
        %1230 = vmatprep.subr.mxu0 0.0
        %1231 = vmatpush1.xpose.msra.mxu0 0.0
        %1232 = vmatprep.subr.mxu0 0.0
        %1233 = vmatpush1.xpose.msra.mxu0 0.0
        %1234 = vmatprep.subr.mxu0 0.0
        %1235 = vmatpush1.xpose.msra.mxu0 0.0
        %1236 = vmatprep.subr.mxu0 0.0
        %1237 = vmatpush1.xpose.msra.mxu0 0.0
        %1238 = vmatprep.subr.mxu0 0.0
        %1239 = vmatpush1.xpose.msra.mxu0 0.0
        %1240 = vmatprep.subr.mxu0 0.0
        %1241 = vmatpush1.xpose.msra.mxu0 0.0
        %1242 = vmatprep.subr.mxu0 0.0
        %1243 = vmatpush1.xpose.msra.mxu0 0.0
        %1244 = vmatprep.subr.mxu0 0.0
        %1245 = vmatpush1.xpose.msra.mxu0 0.0
        %1246 = vmatprep.subr.mxu0 0.0
        %1247 = vmatpush1.xpose.msra.mxu0 0.0
        %1248 = vmatprep.subr.mxu0 0.0
        %1249 = vmatpush1.xpose.msra.mxu0 0.0
        %1250 = vmatprep.subr.mxu0 0.0
        %1251 = vmatpush1.xpose.msra.mxu0 0.0
        %1252 = vmatprep.subr.mxu0 0.0
        %1253 = vmatpush1.xpose.msra.mxu0 0.0
        %1254 = vmatprep.subr.mxu0 0.0
        %1255 = vmatpush1.xpose.msra.mxu0 0.0
        %1256 = vmatprep.subr.mxu0 0.0
        %1257 = vmatpush1.xpose.msra.mxu0 0.0
        %1258 = vmatprep.subr.mxu0 0.0
        %1259 = vmatpush1.xpose.msra.mxu0 0.0
        %1260 = vmatprep.subr.mxu0 0.0
        %1261 = vmatpush1.xpose.msra.mxu0 0.0
        %1262 = vmatprep.subr.mxu0 0.0
        %1263 = vmatpush1.xpose.msra.mxu0 0.0
        %1264 = vmatprep.subr.mxu0 0.0
        %1265 = vmatpush1.xpose.msra.mxu0 0.0
        %1266 = vmatprep.subr.mxu0 0.0
        %1267 = vmatpush1.xpose.msra.mxu0 0.0
        %1268 = vmatprep.mubr.f32.mxu0 0.0
        %1269 = vmatmul.mubr.f32.gmra.mrb[0].mxu0 %v1199
        %v1270 = vpop.f32.mrb[0].mxu0
        %v1271 = vadd.f32 0.0, %v1270
        %v1272 = vpop.f32.mrb[0].mxu0
        %1273 = vdwg.mxu0
        %v1275 = vsel %vm418, %v1116, 0
        %v1278 = vsel %vm418, %v1120, 0
        %1280 = vmatprep.subr.mxu0 0.0
        %1281 = vmatpush1.xpose.msra.mxu0 %v1278
        %1282 = vmatprep.subr.mxu0 0.0
        %1283 = vmatpush1.xpose.msra.mxu0 0.0
        %1284 = vmatprep.subr.mxu0 0.0
        %1285 = vmatpush1.xpose.msra.mxu0 0.0
        %1286 = vmatprep.subr.mxu0 0.0
        %1287 = vmatpush1.xpose.msra.mxu0 0.0
        %1288 = vmatprep.subr.mxu0 0.0
        %1289 = vmatpush1.xpose.msra.mxu0 0.0
        %1290 = vmatprep.subr.mxu0 0.0
        %1291 = vmatpush1.xpose.msra.mxu0 0.0
        %1292 = vmatprep.subr.mxu0 0.0
        %1293 = vmatpush1.xpose.msra.mxu0 0.0
        %1294 = vmatprep.subr.mxu0 0.0
        %1295 = vmatpush1.xpose.msra.mxu0 0.0
        %1296 = vmatprep.subr.mxu0 0.0
        %1297 = vmatpush1.xpose.msra.mxu0 0.0
        %1298 = vmatprep.subr.mxu0 0.0
        %1299 = vmatpush1.xpose.msra.mxu0 0.0
        %1300 = vmatprep.subr.mxu0 0.0
        %1301 = vmatpush1.xpose.msra.mxu0 0.0
        %1302 = vmatprep.subr.mxu0 0.0
        %1303 = vmatpush1.xpose.msra.mxu0 0.0
        %1304 = vmatprep.subr.mxu0 0.0
        %1305 = vmatpush1.xpose.msra.mxu0 0.0
        %1306 = vmatprep.subr.mxu0 0.0
        %1307 = vmatpush1.xpose.msra.mxu0 0.0
        %1308 = vmatprep.subr.mxu0 0.0
        %1309 = vmatpush1.xpose.msra.mxu0 0.0
        %1310 = vmatprep.subr.mxu0 0.0
        %1311 = vmatpush1.xpose.msra.mxu0 0.0
        %1312 = vmatprep.subr.mxu0 0.0
        %1313 = vmatpush1.xpose.msra.mxu0 0.0
        %1314 = vmatprep.subr.mxu0 0.0
        %1315 = vmatpush1.xpose.msra.mxu0 0.0
        %1316 = vmatprep.subr.mxu0 0.0
        %1317 = vmatpush1.xpose.msra.mxu0 0.0
        %1318 = vmatprep.subr.mxu0 0.0
        %1319 = vmatpush1.xpose.msra.mxu0 0.0
        %1320 = vmatprep.subr.mxu0 0.0
        %1321 = vmatpush1.xpose.msra.mxu0 0.0
        %1322 = vmatprep.subr.mxu0 0.0
        %1323 = vmatpush1.xpose.msra.mxu0 0.0
        %1324 = vmatprep.subr.mxu0 0.0
        %1325 = vmatpush1.xpose.msra.mxu0 0.0
        %1326 = vmatprep.subr.mxu0 0.0
        %1327 = vmatpush1.xpose.msra.mxu0 0.0
        %1328 = vmatprep.subr.mxu0 0.0
        %1329 = vmatpush1.xpose.msra.mxu0 0.0
        %1330 = vmatprep.subr.mxu0 0.0
        %1331 = vmatpush1.xpose.msra.mxu0 0.0
        %1332 = vmatprep.subr.mxu0 0.0
        %1333 = vmatpush1.xpose.msra.mxu0 0.0
        %1334 = vmatprep.subr.mxu0 0.0
        %1335 = vmatpush1.xpose.msra.mxu0 0.0
        %1336 = vmatprep.subr.mxu0 0.0
        %1337 = vmatpush1.xpose.msra.mxu0 0.0
        %1338 = vmatprep.subr.mxu0 0.0
        %1339 = vmatpush1.xpose.msra.mxu0 0.0
        %1340 = vmatprep.subr.mxu0 0.0
        %1341 = vmatpush1.xpose.msra.mxu0 0.0
        %1342 = vmatprep.subr.mxu0 0.0
        %1343 = vmatpush1.xpose.msra.mxu0 0.0
        %1344 = vmatprep.mubr.f32.mxu0 0.0
        %1345 = vmatmul.mubr.f32.gmra.mrb[0].mxu0 %v1275
        %v1346 = vpop.f32.mrb[0].mxu0
        %v1347 = vadd.f32 0.0, %v1346
        %v1348 = vpop.f32.mrb[0].mxu0
        %1349 = vdwg.mxu0
        %v1351 = vsel %vm418, %v1117, 0
        %v1354 = vsel %vm418, %v1121, 0
        %1356 = vmatprep.subr.mxu0 0.0
        %1357 = vmatpush1.xpose.msra.mxu0 %v1354
        %1358 = vmatprep.subr.mxu0 0.0
        %1359 = vmatpush1.xpose.msra.mxu0 0.0
        %1360 = vmatprep.subr.mxu0 0.0
        %1361 = vmatpush1.xpose.msra.mxu0 0.0
        %1362 = vmatprep.subr.mxu0 0.0
        %1363 = vmatpush1.xpose.msra.mxu0 0.0
        %1364 = vmatprep.subr.mxu0 0.0
        %1365 = vmatpush1.xpose.msra.mxu0 0.0
        %1366 = vmatprep.subr.mxu0 0.0
        %1367 = vmatpush1.xpose.msra.mxu0 0.0
        %1368 = vmatprep.subr.mxu0 0.0
        %1369 = vmatpush1.xpose.msra.mxu0 0.0
        %1370 = vmatprep.subr.mxu0 0.0
        %1371 = vmatpush1.xpose.msra.mxu0 0.0
        %1372 = vmatprep.subr.mxu0 0.0
        %1373 = vmatpush1.xpose.msra.mxu0 0.0
        %1374 = vmatprep.subr.mxu0 0.0
        %1375 = vmatpush1.xpose.msra.mxu0 0.0
        %1376 = vmatprep.subr.mxu0 0.0
        %1377 = vmatpush1.xpose.msra.mxu0 0.0
        %1378 = vmatprep.subr.mxu0 0.0
        %1379 = vmatpush1.xpose.msra.mxu0 0.0
        %1380 = vmatprep.subr.mxu0 0.0
        %1381 = vmatpush1.xpose.msra.mxu0 0.0
        %1382 = vmatprep.subr.mxu0 0.0
        %1383 = vmatpush1.xpose.msra.mxu0 0.0
        %1384 = vmatprep.subr.mxu0 0.0
        %1385 = vmatpush1.xpose.msra.mxu0 0.0
        %1386 = vmatprep.subr.mxu0 0.0
        %1387 = vmatpush1.xpose.msra.mxu0 0.0
        %1388 = vmatprep.subr.mxu0 0.0
        %1389 = vmatpush1.xpose.msra.mxu0 0.0
        %1390 = vmatprep.subr.mxu0 0.0
        %1391 = vmatpush1.xpose.msra.mxu0 0.0
        %1392 = vmatprep.subr.mxu0 0.0
        %1393 = vmatpush1.xpose.msra.mxu0 0.0
        %1394 = vmatprep.subr.mxu0 0.0
        %1395 = vmatpush1.xpose.msra.mxu0 0.0
        %1396 = vmatprep.subr.mxu0 0.0
        %1397 = vmatpush1.xpose.msra.mxu0 0.0
        %1398 = vmatprep.subr.mxu0 0.0
        %1399 = vmatpush1.xpose.msra.mxu0 0.0
        %1400 = vmatprep.subr.mxu0 0.0
        %1401 = vmatpush1.xpose.msra.mxu0 0.0
        %1402 = vmatprep.subr.mxu0 0.0
        %1403 = vmatpush1.xpose.msra.mxu0 0.0
        %1404 = vmatprep.subr.mxu0 0.0
        %1405 = vmatpush1.xpose.msra.mxu0 0.0
        %1406 = vmatprep.subr.mxu0 0.0
        %1407 = vmatpush1.xpose.msra.mxu0 0.0
        %1408 = vmatprep.subr.mxu0 0.0
        %1409 = vmatpush1.xpose.msra.mxu0 0.0
        %1410 = vmatprep.subr.mxu0 0.0
        %1411 = vmatpush1.xpose.msra.mxu0 0.0
        %1412 = vmatprep.subr.mxu0 0.0
        %1413 = vmatpush1.xpose.msra.mxu0 0.0
        %1414 = vmatprep.subr.mxu0 0.0
        %1415 = vmatpush1.xpose.msra.mxu0 0.0
        %1416 = vmatprep.subr.mxu0 0.0
        %1417 = vmatpush1.xpose.msra.mxu0 0.0
        %1418 = vmatprep.subr.mxu0 0.0
        %1419 = vmatpush1.xpose.msra.mxu0 0.0
        %1420 = vmatprep.mubr.f32.mxu0 0.0
        %1421 = vmatmul.mubr.f32.gmra.mrb[0].mxu0 %v1351
        %v1422 = vpop.f32.mrb[0].mxu0
        %v1423 = vadd.f32 0.0, %v1422
        %v1424 = vpop.f32.mrb[0].mxu0
        %1425 = vdwg.mxu0
        %v1426 = vmul.f32 %v1195, 0.35355338
        %v1427 = vmul.f32 %v1271, 0.35355338
        %v1428 = vmul.f32 %v1347, 0.35355338
        %v1429 = vmul.f32 %v1423, 0.35355338
        %v1430 = vsel %vm727, %v1426, -inf
        %1431 = vmax.xlane.f32.xlu0 %v1430
        %v1432 = vpop.xlane.xlu0 %1431
        %v1433 = vsel %vm727, %v1427, -inf
        %1434 = vmax.xlane.f32.xlu0 %v1433
        %v1435 = vpop.xlane.xlu0 %1434
        %v1436 = vsel %vm727, %v1428, -inf
        %1437 = vmax.xlane.f32.xlu0 %v1436
        %v1438 = vpop.xlane.xlu0 %1437
        %v1439 = vsel %vm727, %v1429, -inf
        %1440 = vmax.xlane.f32.xlu0 %v1439
        %v1441 = vpop.xlane.xlu0 %1440
        %v1442 = vsub.f32 %v1426, %v1432
        %v1443 = vsub.f32 %v1427, %v1435
        %v1444 = vsub.f32 %v1428, %v1438
        %v1445 = vsub.f32 %v1429, %v1441
        %v1446 = vmul.f32 %v1442, 1.442695
        %v1447 = vpow.pop %v1446
        %v1448 = vmul.f32 %v1443, 1.442695
        %v1449 = vpow.pop %v1448
        %v1450 = vmul.f32 %v1444, 1.442695
        %v1451 = vpow.pop %v1450
        %v1452 = vmul.f32 %v1445, 1.442695
        %v1453 = vpow.pop %v1452
        %v1454 = vsel %vm727, %v1447, 0.0
        %1455 = vadd.xlane.f32.xlu0 %v1454
        %v1456 = vpop.xlane.xlu0 %1455
        %v1457 = vsel %vm727, %v1449, 0.0
        %1458 = vadd.xlane.f32.xlu0 %v1457
        %v1459 = vpop.xlane.xlu0 %1458
        %v1460 = vsel %vm727, %v1451, 0.0
        %1461 = vadd.xlane.f32.xlu0 %v1460
        %v1462 = vpop.xlane.xlu0 %1461
        %v1463 = vsel %vm727, %v1453, 0.0
        %1464 = vadd.xlane.f32.xlu0 %v1463
        %v1465 = vpop.xlane.xlu0 %1464
        %v1466 = vrcp.pop %v1456
        %v1467 = vmul.f32 %v1447, %v1466
        %v1468 = vrcp.pop %v1459
        %v1469 = vmul.f32 %v1449, %v1468
        %v1470 = vrcp.pop %v1462
        %v1471 = vmul.f32 %v1451, %v1470
        %v1472 = vrcp.pop %v1465
        %v1473 = vmul.f32 %v1453, %v1472
        %v1474 = vsel %vm727, %v1467, 0.0
        %v1475 = vsel %vm727, %v1471, 0.0
        %v1476 = vadd.f32 %v1474, %v1475
        %v1477 = vsel %vm727, %v1469, 0.0
        %v1478 = vsel %vm727, %v1473, 0.0
        %v1479 = vadd.f32 %v1477, %v1478
        %v1480 = vmul.f32 %v1476, 0.5
        %v1481 = vmul.f32 %v1479, 0.5
        %v1482 = vld [vmem:[%s5] sm:$0xff]
        %v1483 = vld [vmem:[%s5 + $0x8] sm:$0xff]
        %v1485 = vsel %vm782, %v1482, 0
        %v1488 = vsel %vm782, %v1483, 0
        %v1491 = vsel %vm789, %v1480, 0
        %1493 = vmatprep.subr.mxu0 0.0
        %1494 = vmatpush1.msra.mxu0 %v1491
        %1495 = vmatprep.subr.mxu0 0.0
        %1496 = vmatpush1.msra.mxu0 0.0
        %1497 = vmatprep.subr.mxu0 0.0
        %1498 = vmatpush1.msra.mxu0 0.0
        %1499 = vmatprep.subr.mxu0 0.0
        %1500 = vmatpush1.msra.mxu0 0.0
        %1501 = vmatprep.subr.mxu0 0.0
        %1502 = vmatpush1.msra.mxu0 0.0
        %1503 = vmatprep.subr.mxu0 0.0
        %1504 = vmatpush1.msra.mxu0 0.0
        %1505 = vmatprep.subr.mxu0 0.0
        %1506 = vmatpush1.msra.mxu0 0.0
        %1507 = vmatprep.subr.mxu0 0.0
        %1508 = vmatpush1.msra.mxu0 0.0
        %1509 = vmatprep.subr.mxu0 0.0
        %1510 = vmatpush1.msra.mxu0 0.0
        %1511 = vmatprep.subr.mxu0 0.0
        %1512 = vmatpush1.msra.mxu0 0.0
        %1513 = vmatprep.subr.mxu0 0.0
        %1514 = vmatpush1.msra.mxu0 0.0
        %1515 = vmatprep.subr.mxu0 0.0
        %1516 = vmatpush1.msra.mxu0 0.0
        %1517 = vmatprep.subr.mxu0 0.0
        %1518 = vmatpush1.msra.mxu0 0.0
        %1519 = vmatprep.subr.mxu0 0.0
        %1520 = vmatpush1.msra.mxu0 0.0
        %1521 = vmatprep.subr.mxu0 0.0
        %1522 = vmatpush1.msra.mxu0 0.0
        %1523 = vmatprep.subr.mxu0 0.0
        %1524 = vmatpush1.msra.mxu0 0.0
        %1525 = vmatprep.subr.mxu0 0.0
        %1526 = vmatpush1.msra.mxu0 0.0
        %1527 = vmatprep.subr.mxu0 0.0
        %1528 = vmatpush1.msra.mxu0 0.0
        %1529 = vmatprep.subr.mxu0 0.0
        %1530 = vmatpush1.msra.mxu0 0.0
        %1531 = vmatprep.subr.mxu0 0.0
        %1532 = vmatpush1.msra.mxu0 0.0
        %1533 = vmatprep.subr.mxu0 0.0
        %1534 = vmatpush1.msra.mxu0 0.0
        %1535 = vmatprep.subr.mxu0 0.0
        %1536 = vmatpush1.msra.mxu0 0.0
        %1537 = vmatprep.subr.mxu0 0.0
        %1538 = vmatpush1.msra.mxu0 0.0
        %1539 = vmatprep.subr.mxu0 0.0
        %1540 = vmatpush1.msra.mxu0 0.0
        %1541 = vmatprep.subr.mxu0 0.0
        %1542 = vmatpush1.msra.mxu0 0.0
        %1543 = vmatprep.subr.mxu0 0.0
        %1544 = vmatpush1.msra.mxu0 0.0
        %1545 = vmatprep.subr.mxu0 0.0
        %1546 = vmatpush1.msra.mxu0 0.0
        %1547 = vmatprep.subr.mxu0 0.0
        %1548 = vmatpush1.msra.mxu0 0.0
        %1549 = vmatprep.subr.mxu0 0.0
        %1550 = vmatpush1.msra.mxu0 0.0
        %1551 = vmatprep.subr.mxu0 0.0
        %1552 = vmatpush1.msra.mxu0 0.0
        %1553 = vmatprep.subr.mxu0 0.0
        %1554 = vmatpush1.msra.mxu0 0.0
        %1555 = vmatprep.subr.mxu0 0.0
        %1556 = vmatpush1.msra.mxu0 0.0
        %1557 = vmatprep.mubr.f32.mxu0 0.0
        %1558 = vmatmul.mubr.f32.gmra.mrb[0].mxu0 %v1485
        %v1559 = vpop.f32.mrb[0].mxu0
        %v1560 = vadd.f32 0.0, %v1559
        %v1561 = vpop.f32.mrb[0].mxu0
        %1562 = vmatprep.mubr.f32.mxu0 0.0
        %1563 = vmatmul.mubr.f32.gmra.mrb[0].mxu0 %v1488
        %v1564 = vpop.f32.mrb[0].mxu0
        %v1565 = vadd.f32 0.0, %v1564
        %v1566 = vpop.f32.mrb[0].mxu0
        %1567 = vdwg.mxu0
        %v1569 = vsel %vm782, %v1560, 0
        %v1572 = vsel %vm782, %v1565, 0
        %1574 = vmatprep.subr.mxu0 0.0
        %1575 = vmatpush1.xpose.msra.mxu0 %v1485
        %1576 = vmatprep.subr.mxu0 0.0
        %1577 = vmatpush1.xpose.msra.mxu0 %v1488
        %1578 = vmatprep.subr.mxu0 0.0
        %1579 = vmatpush1.xpose.msra.mxu0 0.0
        %1580 = vmatprep.subr.mxu0 0.0
        %1581 = vmatpush1.xpose.msra.mxu0 0.0
        %1582 = vmatprep.subr.mxu0 0.0
        %1583 = vmatpush1.xpose.msra.mxu0 0.0
        %1584 = vmatprep.subr.mxu0 0.0
        %1585 = vmatpush1.xpose.msra.mxu0 0.0
        %1586 = vmatprep.subr.mxu0 0.0
        %1587 = vmatpush1.xpose.msra.mxu0 0.0
        %1588 = vmatprep.subr.mxu0 0.0
        %1589 = vmatpush1.xpose.msra.mxu0 0.0
        %1590 = vmatprep.subr.mxu0 0.0
        %1591 = vmatpush1.xpose.msra.mxu0 0.0
        %1592 = vmatprep.subr.mxu0 0.0
        %1593 = vmatpush1.xpose.msra.mxu0 0.0
        %1594 = vmatprep.subr.mxu0 0.0
        %1595 = vmatpush1.xpose.msra.mxu0 0.0
        %1596 = vmatprep.subr.mxu0 0.0
        %1597 = vmatpush1.xpose.msra.mxu0 0.0
        %1598 = vmatprep.subr.mxu0 0.0
        %1599 = vmatpush1.xpose.msra.mxu0 0.0
        %1600 = vmatprep.subr.mxu0 0.0
        %1601 = vmatpush1.xpose.msra.mxu0 0.0
        %1602 = vmatprep.subr.mxu0 0.0
        %1603 = vmatpush1.xpose.msra.mxu0 0.0
        %1604 = vmatprep.subr.mxu0 0.0
        %1605 = vmatpush1.xpose.msra.mxu0 0.0
        %1606 = vmatprep.subr.mxu0 0.0
        %1607 = vmatpush1.xpose.msra.mxu0 0.0
        %1608 = vmatprep.subr.mxu0 0.0
        %1609 = vmatpush1.xpose.msra.mxu0 0.0
        %1610 = vmatprep.subr.mxu0 0.0
        %1611 = vmatpush1.xpose.msra.mxu0 0.0
        %1612 = vmatprep.subr.mxu0 0.0
        %1613 = vmatpush1.xpose.msra.mxu0 0.0
        %1614 = vmatprep.subr.mxu0 0.0
        %1615 = vmatpush1.xpose.msra.mxu0 0.0
        %1616 = vmatprep.subr.mxu0 0.0
        %1617 = vmatpush1.xpose.msra.mxu0 0.0
        %1618 = vmatprep.subr.mxu0 0.0
        %1619 = vmatpush1.xpose.msra.mxu0 0.0
        %1620 = vmatprep.subr.mxu0 0.0
        %1621 = vmatpush1.xpose.msra.mxu0 0.0
        %1622 = vmatprep.subr.mxu0 0.0
        %1623 = vmatpush1.xpose.msra.mxu0 0.0
        %1624 = vmatprep.subr.mxu0 0.0
        %1625 = vmatpush1.xpose.msra.mxu0 0.0
        %1626 = vmatprep.subr.mxu0 0.0
        %1627 = vmatpush1.xpose.msra.mxu0 0.0
        %1628 = vmatprep.subr.mxu0 0.0
        %1629 = vmatpush1.xpose.msra.mxu0 0.0
        %1630 = vmatprep.subr.mxu0 0.0
        %1631 = vmatpush1.xpose.msra.mxu0 0.0
        %1632 = vmatprep.subr.mxu0 0.0
        %1633 = vmatpush1.xpose.msra.mxu0 0.0
        %1634 = vmatprep.subr.mxu0 0.0
        %1635 = vmatpush1.xpose.msra.mxu0 0.0
        %1636 = vmatprep.subr.mxu0 0.0
        %1637 = vmatpush1.xpose.msra.mxu0 0.0
        %1638 = vmatprep.mubr.f32.mxu0 0.0
        %1639 = vmatmul.mubr.f32.gmra.mrb[0].mxu0 %v1569
        %v1640 = vpop.f32.mrb[0].mxu0
        %v1641 = vadd.f32 0.0, %v1640
        %v1642 = vpop.f32.mrb[0].mxu0
        %1643 = vmatprep.mubr.f32.mxu0 0.0
        %1644 = vmatmul.mubr.f32.gmra.mrb[0].mxu0 %v1572
        %v1645 = vpop.f32.mrb[0].mxu0
        %v1646 = vadd.f32 0.0, %v1645
        %v1647 = vpop.f32.mrb[0].mxu0
        %1648 = vdwg.mxu0
        %1649 = vst.msk [vmem:[%s400] sm:$0xff] %vm949, %v1641
        %1650 = vst.msk [vmem:[%s400 + $0x8] sm:$0xff] %vm949, %v1646
        %v1652 = vsel %vm789, %v1481, 0
        %1654 = vmatprep.subr.mxu0 0.0
        %1655 = vmatpush1.msra.mxu0 %v1652
        %1656 = vmatprep.subr.mxu0 0.0
        %1657 = vmatpush1.msra.mxu0 0.0
        %1658 = vmatprep.subr.mxu0 0.0
        %1659 = vmatpush1.msra.mxu0 0.0
        %1660 = vmatprep.subr.mxu0 0.0
        %1661 = vmatpush1.msra.mxu0 0.0
        %1662 = vmatprep.subr.mxu0 0.0
        %1663 = vmatpush1.msra.mxu0 0.0
        %1664 = vmatprep.subr.mxu0 0.0
        %1665 = vmatpush1.msra.mxu0 0.0
        %1666 = vmatprep.subr.mxu0 0.0
        %1667 = vmatpush1.msra.mxu0 0.0
        %1668 = vmatprep.subr.mxu0 0.0
        %1669 = vmatpush1.msra.mxu0 0.0
        %1670 = vmatprep.subr.mxu0 0.0
        %1671 = vmatpush1.msra.mxu0 0.0
        %1672 = vmatprep.subr.mxu0 0.0
        %1673 = vmatpush1.msra.mxu0 0.0
        %1674 = vmatprep.subr.mxu0 0.0
        %1675 = vmatpush1.msra.mxu0 0.0
        %1676 = vmatprep.subr.mxu0 0.0
        %1677 = vmatpush1.msra.mxu0 0.0
        %1678 = vmatprep.subr.mxu0 0.0
        %1679 = vmatpush1.msra.mxu0 0.0
        %1680 = vmatprep.subr.mxu0 0.0
        %1681 = vmatpush1.msra.mxu0 0.0
        %1682 = vmatprep.subr.mxu0 0.0
        %1683 = vmatpush1.msra.mxu0 0.0
        %1684 = vmatprep.subr.mxu0 0.0
        %1685 = vmatpush1.msra.mxu0 0.0
        %1686 = vmatprep.subr.mxu0 0.0
        %1687 = vmatpush1.msra.mxu0 0.0
        %1688 = vmatprep.subr.mxu0 0.0
        %1689 = vmatpush1.msra.mxu0 0.0
        %1690 = vmatprep.subr.mxu0 0.0
        %1691 = vmatpush1.msra.mxu0 0.0
        %1692 = vmatprep.subr.mxu0 0.0
        %1693 = vmatpush1.msra.mxu0 0.0
        %1694 = vmatprep.subr.mxu0 0.0
        %1695 = vmatpush1.msra.mxu0 0.0
        %1696 = vmatprep.subr.mxu0 0.0
        %1697 = vmatpush1.msra.mxu0 0.0
        %1698 = vmatprep.subr.mxu0 0.0
        %1699 = vmatpush1.msra.mxu0 0.0
        %1700 = vmatprep.subr.mxu0 0.0
        %1701 = vmatpush1.msra.mxu0 0.0
        %1702 = vmatprep.subr.mxu0 0.0
        %1703 = vmatpush1.msra.mxu0 0.0
        %1704 = vmatprep.subr.mxu0 0.0
        %1705 = vmatpush1.msra.mxu0 0.0
        %1706 = vmatprep.subr.mxu0 0.0
        %1707 = vmatpush1.msra.mxu0 0.0
        %1708 = vmatprep.subr.mxu0 0.0
        %1709 = vmatpush1.msra.mxu0 0.0
        %1710 = vmatprep.subr.mxu0 0.0
        %1711 = vmatpush1.msra.mxu0 0.0
        %1712 = vmatprep.subr.mxu0 0.0
        %1713 = vmatpush1.msra.mxu0 0.0
        %1714 = vmatprep.subr.mxu0 0.0
        %1715 = vmatpush1.msra.mxu0 0.0
        %1716 = vmatprep.subr.mxu0 0.0
        %1717 = vmatpush1.msra.mxu0 0.0
        %1718 = vmatprep.mubr.f32.mxu0 0.0
        %1719 = vmatmul.mubr.f32.gmra.mrb[0].mxu0 %v1485
        %v1720 = vpop.f32.mrb[0].mxu0
        %v1721 = vadd.f32 0.0, %v1720
        %v1722 = vpop.f32.mrb[0].mxu0
        %1723 = vmatprep.mubr.f32.mxu0 0.0
        %1724 = vmatmul.mubr.f32.gmra.mrb[0].mxu0 %v1488
        %v1725 = vpop.f32.mrb[0].mxu0
        %v1726 = vadd.f32 0.0, %v1725
        %v1727 = vpop.f32.mrb[0].mxu0
        %1728 = vdwg.mxu0
        %v1730 = vsel %vm782, %v1721, 0
        %v1733 = vsel %vm782, %v1726, 0
        %1735 = vmatprep.subr.mxu0 0.0
        %1736 = vmatpush1.xpose.msra.mxu0 %v1485
        %1737 = vmatprep.subr.mxu0 0.0
        %1738 = vmatpush1.xpose.msra.mxu0 %v1488
        %1739 = vmatprep.subr.mxu0 0.0
        %1740 = vmatpush1.xpose.msra.mxu0 0.0
        %1741 = vmatprep.subr.mxu0 0.0
        %1742 = vmatpush1.xpose.msra.mxu0 0.0
        %1743 = vmatprep.subr.mxu0 0.0
        %1744 = vmatpush1.xpose.msra.mxu0 0.0
        %1745 = vmatprep.subr.mxu0 0.0
        %1746 = vmatpush1.xpose.msra.mxu0 0.0
        %1747 = vmatprep.subr.mxu0 0.0
        %1748 = vmatpush1.xpose.msra.mxu0 0.0
        %1749 = vmatprep.subr.mxu0 0.0
        %1750 = vmatpush1.xpose.msra.mxu0 0.0
        %1751 = vmatprep.subr.mxu0 0.0
        %1752 = vmatpush1.xpose.msra.mxu0 0.0
        %1753 = vmatprep.subr.mxu0 0.0
        %1754 = vmatpush1.xpose.msra.mxu0 0.0
        %1755 = vmatprep.subr.mxu0 0.0
        %1756 = vmatpush1.xpose.msra.mxu0 0.0
        %1757 = vmatprep.subr.mxu0 0.0
        %1758 = vmatpush1.xpose.msra.mxu0 0.0
        %1759 = vmatprep.subr.mxu0 0.0
        %1760 = vmatpush1.xpose.msra.mxu0 0.0
        %1761 = vmatprep.subr.mxu0 0.0
        %1762 = vmatpush1.xpose.msra.mxu0 0.0
        %1763 = vmatprep.subr.mxu0 0.0
        %1764 = vmatpush1.xpose.msra.mxu0 0.0
        %1765 = vmatprep.subr.mxu0 0.0
        %1766 = vmatpush1.xpose.msra.mxu0 0.0
        %1767 = vmatprep.subr.mxu0 0.0
        %1768 = vmatpush1.xpose.msra.mxu0 0.0
        %1769 = vmatprep.subr.mxu0 0.0
        %1770 = vmatpush1.xpose.msra.mxu0 0.0
        %1771 = vmatprep.subr.mxu0 0.0
        %1772 = vmatpush1.xpose.msra.mxu0 0.0
        %1773 = vmatprep.subr.mxu0 0.0
        %1774 = vmatpush1.xpose.msra.mxu0 0.0
        %1775 = vmatprep.subr.mxu0 0.0
        %1776 = vmatpush1.xpose.msra.mxu0 0.0
        %1777 = vmatprep.subr.mxu0 0.0
        %1778 = vmatpush1.xpose.msra.mxu0 0.0
        %1779 = vmatprep.subr.mxu0 0.0
        %1780 = vmatpush1.xpose.msra.mxu0 0.0
        %1781 = vmatprep.subr.mxu0 0.0
        %1782 = vmatpush1.xpose.msra.mxu0 0.0
        %1783 = vmatprep.subr.mxu0 0.0
        %1784 = vmatpush1.xpose.msra.mxu0 0.0
        %1785 = vmatprep.subr.mxu0 0.0
        %1786 = vmatpush1.xpose.msra.mxu0 0.0
        %1787 = vmatprep.subr.mxu0 0.0
        %1788 = vmatpush1.xpose.msra.mxu0 0.0
        %1789 = vmatprep.subr.mxu0 0.0
        %1790 = vmatpush1.xpose.msra.mxu0 0.0
        %1791 = vmatprep.subr.mxu0 0.0
        %1792 = vmatpush1.xpose.msra.mxu0 0.0
        %1793 = vmatprep.subr.mxu0 0.0
        %1794 = vmatpush1.xpose.msra.mxu0 0.0
        %1795 = vmatprep.subr.mxu0 0.0
        %1796 = vmatpush1.xpose.msra.mxu0 0.0
        %1797 = vmatprep.subr.mxu0 0.0
        %1798 = vmatpush1.xpose.msra.mxu0 0.0
        %1799 = vmatprep.mubr.f32.mxu0 0.0
        %1800 = vmatmul.mubr.f32.gmra.mrb[0].mxu0 %v1730
        %v1801 = vpop.f32.mrb[0].mxu0
        %v1802 = vadd.f32 0.0, %v1801
        %v1803 = vpop.f32.mrb[0].mxu0
        %1804 = vmatprep.mubr.f32.mxu0 0.0
        %1805 = vmatmul.mubr.f32.gmra.mrb[0].mxu0 %v1733
        %v1806 = vpop.f32.mrb[0].mxu0
        %v1807 = vadd.f32 0.0, %v1806
        %v1808 = vpop.f32.mrb[0].mxu0
        %1809 = vdwg.mxu0
        %s1810 = scalar_lea.vmem %s400, 16 [#allocation9]
        %1811 = vst.msk [vmem:[%s1810] sm:$0xff] %vm949, %v1802
        %1812 = vst.msk [vmem:[%s1810 + $0x8] sm:$0xff] %vm949, %v1807
        %s1813 = sand.u32 %s185, 1
        %s1814 = scalar_lea.sflag [#allocation4], %s1813
        %s1815 = sand.u32 %s185, 1
        %s1816 = smul.addr %s1815, 32
        %s1817 = scalar_lea.vmem [#allocation8], %s1816
        %s1818 = sand.u32 %s211, 1
        %s1819 = scalar_lea.sflag [#allocation10], %s1818
        %s1820 = sand.u32 %s211, 1
        %s1821 = smul.addr %s1820, 32
        %s1822 = scalar_lea.vmem [#allocation9], %s1821
        // Predicated region
        $region57: #{tpu_custom_call.1} parent=43 // pred_check
          %p1823 = pneg %p195
        $region58: #{tpu_custom_call.1} parent=43 // pred_check_branch
          %1825 = sbr.rel (%p1823) target = $region60
        $region59: #{tpu_custom_call.1} parent=43 // pred_region
          %s1827 = ssub.s32 512, 512
          %1828 = vsyncadd %s1814, %s1827
          %s1829 = smul.addr %s31, 4
          %s1830 = smul.addr %s1829, 128
          %s1831 = scalar_lea.hbm %s6, %s1830
          %s1832 = sshll.u32 %s1817, 4
          %s1833 = int_to_ptr.vmem [resolvable:$true] %s1832
          %1838 = dma.vmem_to_hbm [thread:$0]  %s1833, 512, %s1831, %s1814, 128, 128, 8
        $region60: #{tpu_custom_call.1} parent=43 // pred_fallthru
          _
        // Predicated region
        $region61: #{tpu_custom_call.1} parent=43 // pred_check
          %p1839 = pneg %p221
        $region62: #{tpu_custom_call.1} parent=43 // pred_check_branch
          %1841 = sbr.rel (%p1839) target = $region64
        $region63: #{tpu_custom_call.1} parent=43 // pred_region
          %s1843 = ssub.s32 512, 512
          %1844 = vsyncadd %s1819, %s1843
          %s1845 = smul.addr %s31, 4
          %s1846 = smul.addr %s1845, 128
          %s1847 = scalar_lea.hbm %s7, %s1846
          %s1848 = sshll.u32 %s1822, 4
          %s1849 = int_to_ptr.vmem [resolvable:$true] %s1848
          %1854 = dma.vmem_to_hbm [thread:$0]  %s1849, 512, %s1847, %s1819, 128, 128, 8
        $region64: #{tpu_custom_call.1} parent=43 // pred_fallthru
          _
      $region44: #{tpu_custom_call.1} parent=5 // pred_fallthru
        _
      %p1855 = scmp.le.s32.totalorder 2, %s26
      // Predicated region
      $region65: #{tpu_custom_call.1} parent=5 // pred_check
        %p1856 = pneg %p1855
      $region66: #{tpu_custom_call.1} parent=5 // pred_check_branch
        %1858 = sbr.rel (%p1856) target = $region68
      $region67: #{tpu_custom_call.1} parent=5 // pred_region
        %s1859 = ssub.s32 %s26, 2
        // Predicated region
        $region69: #{tpu_custom_call.1} parent=67 // pred_check
          %p1860 = pneg %p201
        $region70: #{tpu_custom_call.1} parent=67 // pred_check_branch
          %1862 = sbr.rel (%p1860) target = $region72
        $region71: #{tpu_custom_call.1} parent=67 // pred_region
          %s1863 = sand.u32 %s186, 1
          %s1864 = scalar_lea.sflag [#allocation4], %s1863
          %s1865 = sand.u32 %s186, 1
          %s1866 = smul.addr %s1865, 32
          %s1867 = scalar_lea.vmem [#allocation8], %s1866
          %1868 = dma.done %s1864, 512
        $region72: #{tpu_custom_call.1} parent=67 // pred_fallthru
          _
        // Predicated region
        $region73: #{tpu_custom_call.1} parent=67 // pred_check
          %p1869 = pneg %p227
        $region74: #{tpu_custom_call.1} parent=67 // pred_check_branch
          %1871 = sbr.rel (%p1869) target = $region76
        $region75: #{tpu_custom_call.1} parent=67 // pred_region
          %s1872 = sand.u32 %s212, 1
          %s1873 = scalar_lea.sflag [#allocation10], %s1872
          %s1874 = sand.u32 %s212, 1
          %s1875 = smul.addr %s1874, 32
          %s1876 = scalar_lea.vmem [#allocation9], %s1875
          %1877 = dma.done %s1873, 512
        $region76: #{tpu_custom_call.1} parent=67 // pred_fallthru
          _
      $region68: #{tpu_custom_call.1} parent=5 // pred_fallthru
        _
    $region6: #{tpu_custom_call.1} parent=1 // loop_footer
      %s30 = sadd.s32 1, %s26
    $region7: #{tpu_custom_call.1} parent=1 // loop_footer_branch
      %25 = sbr.rel target = $region3
    $region8: #{tpu_custom_call.1} parent=1 // loop_exit
      _
    %1878 = vsyncpa [#allocation3], 1
    %s1879 = scalar_lea.sflag [#allocation3], 1
    %1880 = vsyncpa %s1879, 1
    %1881 = vsyncpa [#allocation6], 1
    %s1882 = scalar_lea.sflag [#allocation6], 1
    %1883 = vsyncpa %s1882, 1
    %1884 = vsyncpa [#allocation4], 1
    %s1885 = scalar_lea.sflag [#allocation4], 1
    %1886 = vsyncpa %s1885, 1
    %1887 = vsyncpa [#allocation10], 1
    %s1888 = scalar_lea.sflag [#allocation10], 1
    %1889 = vsyncpa %s1888, 1

</llo_original>
